<compile_context>
chip_gen: v7x
topology: tpu7x:2x2x1
jax: 0.10.0
libtpu: 0.0.40
codegen_flags: <defaults>
</compile_context>

<pallas_src>
import functools

import jax
import jax.numpy as jnp
from jax.experimental import pallas as pl
from jax.experimental.pallas import tpu as pltpu


COMPUTE_DTYPE = jnp.bfloat16          # MXU-native operand dtype (f32 accumulate)
LANE = 128                            # pad feature dims to lane width
X_RESIDENT_BYTES = 8 * 1024 * 1024    # keep x fully VMEM-resident below this


# ----------------------------- helpers -----------------------------

def _round_up(n, m):
    return (n + m - 1) // m * m


def _pad_dim_and_tile(n):
    """Return (padded node count, row tile, K tile) with tiles dividing the pad.

    * large graphs: tm=512 / tk=1024 (perf feedback: biggest single lever)
    * small graphs: 2 row tiles so both v7x TensorCores get work
    * all row tiles are multiples of 32 (int8 adjacency sublane packing)
    """
    if n <= 256:
        npad = _round_up(n, 128)
        return npad, npad // 2, npad          # 2 row tiles, single K tile
    if n <= 4096:
        npad = _round_up(n, 512)
        return npad, 256, 512
    npad = _round_up(n, 1024)
    return npad, 512, 1024


def _pad2(x, rows, cols, dtype):
    """Zero-pad a 2-D array to (rows, cols) and cast (exact for matmul)."""
    r, c = x.shape
    out = jnp.zeros((rows, cols), dtype)
    return out.at[:r, :c].set(x.astype(dtype))


@functools.lru_cache(maxsize=None)
def _vmem_limit_bytes():
    """Generation-aware scoped-VMEM budget: ~96 MiB v5e/v6e, ~48 MiB v7x."""
    try:
        cap = int(pltpu.get_tpu_info().vmem_capacity_bytes)
    except Exception:  # conservative fallback if the query is unavailable
        cap = 64 * 1024 * 1024
    return max(32 * 1024 * 1024, (cap * 3) // 4)


def _compiler_params():
    return pltpu.CompilerParams(
        dimension_semantics=("parallel", "arbitrary"),
        vmem_limit_bytes=_vmem_limit_bytes(),
    )


def _adj_x_specs(tm, tk, n_k, x_width, x_dtype):
    """BlockSpecs for the adjacency stream and the dense-feature operand x."""
    n_k_tiles = n_k // tk
    extra = {}
    if n_k_tiles >= 3:
        # deeper buffering keeps v5e's slower HBM saturated on long K axes
        extra["pipeline_mode"] = pl.Buffered(3)
    adj_spec = pl.BlockSpec((tm, tk), lambda i, k: (i, k), **extra)

    x_bytes = n_k * x_width * jnp.dtype(x_dtype).itemsize
    x_resident = x_bytes <= X_RESIDENT_BYTES
    if x_resident:
        # constant index map -> DMA'd once, resident across the whole grid;
        # kernel slices the K tile itself (no per-row-tile re-streaming of x)
        x_spec = pl.BlockSpec((n_k, x_width), lambda i, k: (0, 0))
    else:
        x_spec = pl.BlockSpec((tk, x_width), lambda i, k: (k, 0), **extra)
    return adj_spec, x_spec, x_resident


# ----------------------------- Pallas kernels -----------------------------

def _accumulate(acc_ref, prod, k):
    @pl.when(k == 0)
    def _():
        acc_ref[...] = prod            # first K tile: direct write, no zero pass

    @pl.when(k > 0)
    def _():
        acc_ref[...] += prod


def _load_x_tile(x_ref, k, tk, x_resident):
    if x_resident:
        start = pl.multiple_of(k * tk, tk)
        return x_ref[pl.ds(start, tk), :]
    return x_ref[...]


def _gcn_kernel(adj_ref, x_ref, w_ref, out_ref, acc_ref, *,
                compute_dtype, tk, x_resident, precision):
    """out = ReLU((adj @ x) @ W); grid = (row tiles, K tiles), K last."""
    k = pl.program_id(1)

    adj = adj_ref[...].astype(compute_dtype)          # int8 -> MXU dtype (VPU slot)
    x = _load_x_tile(x_ref, k, tk, x_resident)
    prod = jnp.dot(adj, x, preferred_element_type=jnp.float32, precision=precision)
    _accumulate(acc_ref, prod, k)

    @pl.when(k == pl.num_programs(1) - 1)
    def _():
        agg = acc_ref[...].astype(compute_dtype)
        out = jnp.dot(agg, w_ref[...], preferred_element_type=jnp.float32,
                      precision=precision)
        out_ref[...] = jnp.maximum(out, 0.0).astype(out_ref.dtype)


def _gcn_head_kernel(alpha_ref, adj_ref, x_ref, fea_ref,
                     wg_ref, w1a_ref, w1b_ref, b1_ref, w2_ref, b2_ref,
                     out_ref, acc_ref, *,
                     compute_dtype, tk, x_resident, precision):
    """Fused: stage-2 GCN + concat + Linear/ReLU + Linear + PReLU.

       g   = ReLU((adj @ x) @ Wg)                    # stage-2 GCN
       h   = ReLU(concat([g, fea]) @ W1 + b1)        # == g@W1a + fea@W1b + b1
       out = PReLU(h @ W2 + b2, alpha)
    """
    k = pl.program_id(1)

    adj = adj_ref[...].astype(compute_dtype)
    x = _load_x_tile(x_ref, k, tk, x_resident)
    prod = jnp.dot(adj, x, preferred_element_type=jnp.float32, precision=precision)
    _accumulate(acc_ref, prod, k)

    @pl.when(k == pl.num_programs(1) - 1)
    def _():
        agg = acc_ref[...].astype(compute_dtype)
        g = jnp.dot(agg, wg_ref[...], preferred_element_type=jnp.float32,
                    precision=precision)
        g = jnp.maximum(g, 0.0).astype(compute_dtype)

        h = jnp.dot(g, w1a_ref[...], preferred_element_type=jnp.float32,
                    precision=precision)
        h += jnp.dot(fea_ref[...], w1b_ref[...],
                     preferred_element_type=jnp.float32, precision=precision)
        h = jnp.maximum(h + b1_ref[...], 0.0).astype(compute_dtype)

        y = jnp.dot(h, w2_ref[...], preferred_element_type=jnp.float32,
                    precision=precision)
        y = y + b2_ref[...]

        a = alpha_ref[0]                      # single-slope PReLU, read once (SMEM)
        out_ref[...] = jnp.where(y > 0.0, y, a * y).astype(out_ref.dtype)


# ----------------------------- pallas_call wrappers -----------------------------

def gcn_layer(adj, x, w, *, tm, tk, compute_dtype, precision, out_dtype):
    """adj: (Rp, Kp) int8; x: (Kp, INp); w: (INp, Fp); all tile-aligned."""
    n_rows, n_k = adj.shape
    in_f = x.shape[1]
    f = w.shape[1]
    assert n_rows % tm == 0 and n_k % tk == 0
    adj_spec, x_spec, x_resident = _adj_x_specs(tm, tk, n_k, in_f, x.dtype)
    kernel = functools.partial(_gcn_kernel, compute_dtype=compute_dtype, tk=tk,
                               x_resident=x_resident, precision=precision)
    return pl.pallas_call(
        kernel,
        out_shape=jax.ShapeDtypeStruct((n_rows, f), out_dtype),
        grid=(n_rows // tm, n_k // tk),
        in_specs=[
            adj_spec,                                     # adjacency tile (int8)
            x_spec,                                       # features (resident / K-tiled)
            pl.BlockSpec((in_f, f), lambda i, k: (0, 0)),  # weight (resident)
        ],
        out_specs=pl.BlockSpec((tm, f), lambda i, k: (i, 0)),
        scratch_shapes=[pltpu.VMEM((tm, in_f), jnp.float32)],
        compiler_params=_compiler_params(),
    )(adj, x, w)


def gcn_head_fused(alpha, adj, x, fea, wg, w1a, w1b, b1, w2, b2, *,
                   tm, tk, compute_dtype, precision, out_dtype):
    n_rows, n_k = adj.shape
    xf = x.shape[1]                      # width of stage-1 activation (== Fp)
    f = wg.shape[1]
    in_f = fea.shape[1]
    assert n_rows % tm == 0 and n_k % tk == 0
    adj_spec, x_spec, x_resident = _adj_x_specs(tm, tk, n_k, xf, x.dtype)
    kernel = functools.partial(_gcn_head_kernel, compute_dtype=compute_dtype, tk=tk,
                               x_resident=x_resident, precision=precision)
    return pl.pallas_call(
        kernel,
        out_shape=jax.ShapeDtypeStruct((n_rows, f), out_dtype),
        grid=(n_rows // tm, n_k // tk),
        in_specs=[
            pl.BlockSpec(memory_space=pltpu.MemorySpace.SMEM),  # alpha (scalar)
            adj_spec,                                           # adjacency tile
            x_spec,                                             # stage-1 activation
            pl.BlockSpec((tm, in_f), lambda i, k: (i, 0)),      # raw features
            pl.BlockSpec((xf, f), lambda i, k: (0, 0)),         # W_gc2
            pl.BlockSpec((f, f), lambda i, k: (0, 0)),          # W1 (gcn part)
            pl.BlockSpec((in_f, f), lambda i, k: (0, 0)),       # W1 (feature part)
            pl.BlockSpec((1, f), lambda i, k: (0, 0)),          # b1
            pl.BlockSpec((f, f), lambda i, k: (0, 0)),          # W2
            pl.BlockSpec((1, f), lambda i, k: (0, 0)),          # b2
        ],
        out_specs=pl.BlockSpec((tm, f), lambda i, k: (i, 0)),
        scratch_shapes=[pltpu.VMEM((tm, xf), jnp.float32)],
        compiler_params=_compiler_params(),
    )(alpha, adj, x, fea, wg, w1a, w1b, b1, w2, b2)


# ----------------------------- parameter init -----------------------------

def xavier_uniform(key, fan_in, fan_out):
    bound = jnp.sqrt(6.0 / (fan_in + fan_out))
    return jax.random.uniform(key, (fan_in, fan_out), jnp.float32, -bound, bound)


def init_dgcn_params(key, v_in_ft, u_in_ft, out_ft):
    ks = jax.random.split(key, 12)
    p = {}
    # GCN weights (in_ft, out_ft), no bias (DGCN builds GCN with isBias=False)
    p["W_v1"] = xavier_uniform(ks[0], v_in_ft, out_ft)
    p["W_v2"] = xavier_uniform(ks[1], out_ft, out_ft)
    p["W_u1"] = xavier_uniform(ks[2], u_in_ft, out_ft)
    p["W_u2"] = xavier_uniform(ks[3], out_ft, out_ft)
    # Linear layers stored as (in, out), biases as (1, out)
    p["W_ufc"] = xavier_uniform(ks[4], out_ft + u_in_ft, out_ft)
    p["b_ufc"] = jax.random.uniform(ks[5], (1, out_ft), jnp.float32, -0.1, 0.1)
    p["W_vfc"] = xavier_uniform(ks[6], out_ft + v_in_ft, out_ft)
    p["b_vfc"] = jax.random.uniform(ks[7], (1, out_ft), jnp.float32, -0.1, 0.1)
    p["W_ufc2"] = xavier_uniform(ks[8], out_ft, out_ft)
    p["b_ufc2"] = jax.random.uniform(ks[9], (1, out_ft), jnp.float32, -0.1, 0.1)
    p["W_vfc2"] = xavier_uniform(ks[10], out_ft, out_ft)
    p["b_vfc2"] = jax.random.uniform(ks[11], (1, out_ft), jnp.float32, -0.1, 0.1)
    # shared PReLU slope (nn.PReLU() default init = 0.25)
    p["alpha"] = jnp.full((1,), 0.25, jnp.float32)
    return p


# ----------------------------- DGCN forward -----------------------------

def prepare_adjacency(uv_adj, vu_adj):
    """Pad + int8-cast adjacency ONCE outside the jitted per-call forward.

    Adjacency is 0/1 so int8 is exact; it is the dominant HBM stream, so
    storing it at 1 byte/elem and never re-padding it per call is the cheapest
    bandwidth win available.
    """
    nu, nv = uv_adj.shape
    nu_p, _, _ = _pad_dim_and_tile(nu)
    nv_p, _, _ = _pad_dim_and_tile(nv)
    uv_adj_p = _pad2(uv_adj, nu_p, nv_p, jnp.int8)
    vu_adj_p = _pad2(vu_adj, nv_p, nu_p, jnp.int8)
    return uv_adj_p, vu_adj_p


def dgcn_forward(params, uv_adj_p, vu_adj_p, ufea, vfea, *,
                 compute_dtype=COMPUTE_DTYPE):
    nu, u_in = ufea.shape
    nv, v_in = vfea.shape
    out_ft = params["W_u1"].shape[1]

    nu_p, tm_u, tk_u = _pad_dim_and_tile(nu)
    nv_p, tm_v, tk_v = _pad_dim_and_tile(nv)
    assert uv_adj_p.shape == (nu_p, nv_p), "adjacency not prepared for this graph"
    assert vu_adj_p.shape == (nv_p, nu_p), "adjacency not prepared for this graph"

    u_in_p = _round_up(u_in, LANE)
    v_in_p = _round_up(v_in, LANE)
    f_p = _round_up(out_ft, LANE)

    cdt = compute_dtype
    # f32 compute dtype = validation path: true-f32 MXU matmuls
    precision = (jax.lax.Precision.HIGHEST
                 if jnp.dtype(cdt) == jnp.dtype(jnp.float32) else None)

    ufea_p = _pad2(ufea, nu_p, u_in_p, cdt)
    vfea_p = _pad2(vfea, nv_p, v_in_p, cdt)

    W_u1 = _pad2(params["W_u1"], u_in_p, f_p, cdt)
    W_v1 = _pad2(params["W_v1"], v_in_p, f_p, cdt)
    W_u2 = _pad2(params["W_u2"], f_p, f_p, cdt)
    W_v2 = _pad2(params["W_v2"], f_p, f_p, cdt)

    # split concat FC weights: rows [:out_ft] hit the GCN output, rest hit raw fea
    W_ufc_a = _pad2(params["W_ufc"][:out_ft], f_p, f_p, cdt)
    W_ufc_b = _pad2(params["W_ufc"][out_ft:], u_in_p, f_p, cdt)
    W_vfc_a = _pad2(params["W_vfc"][:out_ft], f_p, f_p, cdt)
    W_vfc_b = _pad2(params["W_vfc"][out_ft:], v_in_p, f_p, cdt)
    W_ufc2 = _pad2(params["W_ufc2"], f_p, f_p, cdt)
    W_vfc2 = _pad2(params["W_vfc2"], f_p, f_p, cdt)
    b_ufc = _pad2(params["b_ufc"], 1, f_p, jnp.float32)
    b_vfc = _pad2(params["b_vfc"], 1, f_p, jnp.float32)
    b_ufc2 = _pad2(params["b_ufc2"], 1, f_p, jnp.float32)
    b_vfc2 = _pad2(params["b_vfc2"], 1, f_p, jnp.float32)
    alpha = params["alpha"].astype(jnp.float32)

    # ---- stage-1 GCN layers: ReLU((adj @ x) @ W) ----
    vu = gcn_layer(vu_adj_p, ufea_p, W_u1, tm=tm_v, tk=tk_u,
                   compute_dtype=cdt, precision=precision, out_dtype=cdt)   # (Nv_p, Fp)
    uv = gcn_layer(uv_adj_p, vfea_p, W_v1, tm=tm_u, tk=tk_v,
                   compute_dtype=cdt, precision=precision, out_dtype=cdt)   # (Nu_p, Fp)

    # ---- stage-2 GCN fused with concat + FC head + PReLU (one kernel per side) ----
    # cap the fused-head row tile so the multi-matmul epilogue stays spill-free
    head_tm_u = min(tm_u, 256)
    head_tm_v = min(tm_v, 256)
    Hu = gcn_head_fused(alpha, uv_adj_p, vu, ufea_p,
                        W_v2, W_ufc_a, W_ufc_b, b_ufc, W_ufc2, b_ufc2,
                        tm=head_tm_u, tk=tk_v, compute_dtype=cdt,
                        precision=precision, out_dtype=jnp.float32)
    Hv = gcn_head_fused(alpha, vu_adj_p, uv, vfea_p,
                        W_u2, W_vfc_a, W_vfc_b, b_vfc, W_vfc2, b_vfc2,
                        tm=head_tm_v, tk=tk_u, compute_dtype=cdt,
                        precision=precision, out_dtype=jnp.float32)

    return Hu[:nu, :out_ft], Hv[:nv, :out_ft]   # (act(Hu), act(Hv))


# ----------------------------- plain-JAX reference -----------------------------

def dgcn_reference(params, uv_adj, vu_adj, ufea, vfea):
    hp = jax.lax.Precision.HIGHEST

    def mm(a, b):
        return jnp.dot(a, b, precision=hp)

    def gcn(adj, x, w):
        return jax.nn.relu(mm(adj, mm(x, w)))

    def head(h, w1, b1, w2, b2):
        h = jax.nn.relu(mm(h, w1) + b1)
        y = mm(h, w2) + b2
        a = params["alpha"][0]
        return jnp.where(y > 0, y, a * y)

    vu = gcn(vu_adj, ufea, params["W_u1"])
    uv = gcn(uv_adj, vfea, params["W_v1"])
    uv2 = gcn(uv_adj, vu, params["W_v2"])
    vu2 = gcn(vu_adj, uv, params["W_u2"])
    Hv = jnp.concatenate([vu2, vfea], axis=1)
    Hu = jnp.concatenate([uv2, ufea], axis=1)
    Hu = head(Hu, params["W_ufc"], params["b_ufc"], params["W_ufc2"], params["b_ufc2"])
    Hv = head(Hv, params["W_vfc"], params["b_vfc"], params["W_vfc2"], params["b_vfc2"])
    return Hu, Hv


# ----------------------------- main -----------------------------

if __name__ == "__main__":
    Nu, Nv = 16, 24
    u_in_ft, v_in_ft, out_ft = 8, 16, 32

    key = jax.random.PRNGKey(0)
    k_adj_uv, k_adj_vu, k_u, k_v, k_param = jax.random.split(key, 5)

    # dense adjacency (torch.spmm semantics == dense matmul)
    uv_adj = (jax.random.uniform(k_adj_uv, (Nu, Nv)) < 0.3).astype(jnp.float32)
    vu_adj = (jax.random.uniform(k_adj_vu, (Nv, Nu)) < 0.3).astype(jnp.float32)
    ufea = jax.random.normal(k_u, (Nu, u_in_ft), jnp.float32)
    vfea = jax.random.normal(k_v, (Nv, v_in_ft), jnp.float32)

    params = init_dgcn_params(k_param, v_in_ft, u_in_ft, out_ft)

    # adjacency is static across calls: pad + int8-cast it once, outside jit
    uv_adj_p, vu_adj_p = prepare_adjacency(uv_adj, vu_adj)

    fwd_bf16 = jax.jit(functools.partial(dgcn_forward, compute_dtype=jnp.bfloat16))
    fwd_f32 = jax.jit(functools.partial(dgcn_forward, compute_dtype=jnp.float32))

    # perf path (bf16 MXU operands, f32 accumulation)
    Hu, Hv = fwd_bf16(params, uv_adj_p, vu_adj_p, ufea, vfea)
    jax.block_until_ready((Hu, Hv))
    assert Hu.shape == (Nu, out_ft) and Hv.shape == (Nv, out_ft)

    Hu_ref, Hv_ref = dgcn_reference(params, uv_adj, vu_adj, ufea, vfea)

    # bf16-operand tolerance (documented: error comes from bf16 rounding only)
    assert jnp.allclose(Hu, Hu_ref, rtol=1e-1, atol=1e-1)
    assert jnp.allclose(Hv, Hv_ref, rtol=1e-1, atol=1e-1)

    # structural-correctness check: same kernels at f32 compute dtype, tight tol
    Hu32, Hv32 = fwd_f32(params, uv_adj_p, vu_adj_p, ufea, vfea)
    jax.block_until_ready((Hu32, Hv32))
    assert jnp.allclose(Hu32, Hu_ref, rtol=1e-3, atol=1e-3)
    assert jnp.allclose(Hv32, Hv_ref, rtol=1e-3, atol=1e-3)

    print("KERNEL_OK")
</pallas_src>

<mosaic_0001>
module attributes {stable_mosaic.version = 11 : i64} {
  func.func @_gcn_head_kernel(%arg0: i32, %arg1: i32, %arg2: memref<1xf32, #tpu.memory_space<smem>>, %arg3: memref<64x128xi8, #tpu.memory_space<vmem>>, %arg4: memref<128x128xbf16, #tpu.memory_space<vmem>>, %arg5: memref<64x128xbf16, #tpu.memory_space<vmem>>, %arg6: memref<128x128xbf16, #tpu.memory_space<vmem>>, %arg7: memref<128x128xbf16, #tpu.memory_space<vmem>>, %arg8: memref<128x128xbf16, #tpu.memory_space<vmem>>, %arg9: memref<1x128xf32, #tpu.memory_space<vmem>>, %arg10: memref<128x128xbf16, #tpu.memory_space<vmem>>, %arg11: memref<1x128xf32, #tpu.memory_space<vmem>>, %arg12: memref<64x128xf32, #tpu.memory_space<vmem>>, %arg13: memref<64x128xf32, #tpu.memory_space<vmem>>) attributes {dimension_semantics = [#tpu.dimension_semantics<parallel>, #tpu.dimension_semantics<arbitrary>], iteration_bounds = array<i64: 2, 1>, scalar_prefetch = 0 : i64, scratch_operands = 1 : i64, tpu.core_type = #tpu.core_type<tc>, window_params = [{transform_indices = @transform_0, window_bounds = array<i64: 1>}, {transform_indices = @transform_1, window_bounds = array<i64: 64, 128>}, {pipeline_mode = #tpu.pipeline_mode<synchronous>, transform_indices = @transform_2, window_bounds = array<i64: 128, 128>}, {transform_indices = @transform_3, window_bounds = array<i64: 64, 128>}, {pipeline_mode = #tpu.pipeline_mode<synchronous>, transform_indices = @transform_4, window_bounds = array<i64: 128, 128>}, {pipeline_mode = #tpu.pipeline_mode<synchronous>, transform_indices = @transform_5, window_bounds = array<i64: 128, 128>}, {pipeline_mode = #tpu.pipeline_mode<synchronous>, transform_indices = @transform_6, window_bounds = array<i64: 128, 128>}, {pipeline_mode = #tpu.pipeline_mode<synchronous>, transform_indices = @transform_7, window_bounds = array<i64: 1, 128>}, {pipeline_mode = #tpu.pipeline_mode<synchronous>, transform_indices = @transform_8, window_bounds = array<i64: 128, 128>}, {pipeline_mode = #tpu.pipeline_mode<synchronous>, transform_indices = @transform_9, window_bounds = array<i64: 1, 128>}, {transform_indices = @transform_10, window_bounds = array<i64: 64, 128>}]} {
    %c0 = arith.constant 0 : index
    %c0_0 = arith.constant 0 : index
    %0 = vector.load %arg3[%c0, %c0_0] : memref<64x128xi8, #tpu.memory_space<vmem>>, vector<64x128xi8>
    %1 = arith.sitofp %0 : vector<64x128xi8> to vector<64x128xbf16>
    %c128_i32 = arith.constant 128 : i32
    %2 = arith.muli %arg1, %c128_i32 : i32
    %3 = tpu.assume_multiple %2, 128 : i32
    %4 = arith.index_cast %3 : i32 to index
    %c0_1 = arith.constant 0 : index
    %5 = vector.load %arg4[%4, %c0_1] : memref<128x128xbf16, #tpu.memory_space<vmem>>, vector<128x128xbf16>
    %cst = arith.constant dense<0.000000e+00> : vector<64x128xf32>
    %6 = tpu.matmul %1, %5, %cst {dimension_numbers = #tpu.dot_dimension_numbers<[1], [0], [0], [1], [0, 0, 1, 1], [], []>} : vector<64x128xbf16>, vector<128x128xbf16>, vector<64x128xf32> -> vector<64x128xf32>
    %c0_i32 = arith.constant 0 : i32
    %7 = arith.cmpi eq, %arg1, %c0_i32 : i32
    %8 = arith.extui %7 : i1 to i32
    %c0_i32_2 = arith.constant 0 : i32
    %9 = arith.cmpi ne, %8, %c0_i32_2 : i32
    scf.if %9 {
      %c0_7 = arith.constant 0 : index
      %c0_8 = arith.constant 0 : index
      %16 = vector.load %arg13[%c0_7, %c0_8] : memref<64x128xf32, #tpu.memory_space<vmem>>, vector<64x128xf32>
      tpu.vector_store %arg13[%c0_7, %c0_8], %6 {strides = array<i32>} : memref<64x128xf32, #tpu.memory_space<vmem>>, vector<64x128xf32>,
    } else {
    }
    %c0_i32_3 = arith.constant 0 : i32
    %10 = arith.cmpi sgt, %arg1, %c0_i32_3 : i32
    %11 = arith.extui %10 : i1 to i32
    %c0_i32_4 = arith.constant 0 : i32
    %12 = arith.cmpi ne, %11, %c0_i32_4 : i32
    scf.if %12 {
      %c0_7 = arith.constant 0 : index
      %c0_8 = arith.constant 0 : index
      %16 = vector.load %arg13[%c0_7, %c0_8] : memref<64x128xf32, #tpu.memory_space<vmem>>, vector<64x128xf32>
      %17 = arith.addf %16, %6 : vector<64x128xf32>
      %c0_9 = arith.constant 0 : index
      %c0_10 = arith.constant 0 : index
      %18 = vector.load %arg13[%c0_9, %c0_10] : memref<64x128xf32, #tpu.memory_space<vmem>>, vector<64x128xf32>
      tpu.vector_store %arg13[%c0_9, %c0_10], %17 {strides = array<i32>} : memref<64x128xf32, #tpu.memory_space<vmem>>, vector<64x128xf32>,
    } else {
    }
    %c0_i32_5 = arith.constant 0 : i32
    %13 = arith.cmpi eq, %arg1, %c0_i32_5 : i32
    %14 = arith.extui %13 : i1 to i32
    %c0_i32_6 = arith.constant 0 : i32
    %15 = arith.cmpi ne, %14, %c0_i32_6 : i32
    scf.if %15 {
      %c0_7 = arith.constant 0 : index
      %c0_8 = arith.constant 0 : index
      %16 = vector.load %arg13[%c0_7, %c0_8] : memref<64x128xf32, #tpu.memory_space<vmem>>, vector<64x128xf32>
      %17 = arith.truncf %16 : vector<64x128xf32> to vector<64x128xbf16>
      %c0_9 = arith.constant 0 : index
      %c0_10 = arith.constant 0 : index
      %18 = vector.load %arg6[%c0_9, %c0_10] : memref<128x128xbf16, #tpu.memory_space<vmem>>, vector<128x128xbf16>
      %cst_11 = arith.constant dense<0.000000e+00> : vector<64x128xf32>
      %19 = tpu.matmul %17, %18, %cst_11 {dimension_numbers = #tpu.dot_dimension_numbers<[1], [0], [0], [1], [0, 0, 1, 1], [], []>} : vector<64x128xbf16>, vector<128x128xbf16>, vector<64x128xf32> -> vector<64x128xf32>
      %cst_12 = arith.constant 0.000000e+00 : f32
      %20 = vector.broadcast %cst_12 : f32 to vector<64x128xf32>
      %21 = arith.maximumf %19, %20 : vector<64x128xf32>
      %22 = arith.truncf %21 : vector<64x128xf32> to vector<64x128xbf16>
      %c0_13 = arith.constant 0 : index
      %c0_14 = arith.constant 0 : index
      %23 = vector.load %arg7[%c0_13, %c0_14] : memref<128x128xbf16, #tpu.memory_space<vmem>>, vector<128x128xbf16>
      %cst_15 = arith.constant dense<0.000000e+00> : vector<64x128xf32>
      %24 = tpu.matmul %22, %23, %cst_15 {dimension_numbers = #tpu.dot_dimension_numbers<[1], [0], [0], [1], [0, 0, 1, 1], [], []>} : vector<64x128xbf16>, vector<128x128xbf16>, vector<64x128xf32> -> vector<64x128xf32>
      %c0_16 = arith.constant 0 : index
      %c0_17 = arith.constant 0 : index
      %25 = vector.load %arg5[%c0_16, %c0_17] : memref<64x128xbf16, #tpu.memory_space<vmem>>, vector<64x128xbf16>
      %c0_18 = arith.constant 0 : index
      %c0_19 = arith.constant 0 : index
      %26 = vector.load %arg8[%c0_18, %c0_19] : memref<128x128xbf16, #tpu.memory_space<vmem>>, vector<128x128xbf16>
      %cst_20 = arith.constant dense<0.000000e+00> : vector<64x128xf32>
      %27 = tpu.matmul %25, %26, %cst_20 {dimension_numbers = #tpu.dot_dimension_numbers<[1], [0], [0], [1], [0, 0, 1, 1], [], []>} : vector<64x128xbf16>, vector<128x128xbf16>, vector<64x128xf32> -> vector<64x128xf32>
      %28 = arith.addf %24, %27 : vector<64x128xf32>
      %c0_21 = arith.constant 0 : index
      %c0_22 = arith.constant 0 : index
      %29 = vector.load %arg9[%c0_21, %c0_22] : memref<1x128xf32, #tpu.memory_space<vmem>>, vector<1x128xf32>
      %30 = vector.broadcast %29 : vector<1x128xf32> to vector<64x128xf32>
      %31 = arith.addf %28, %30 : vector<64x128xf32>
      %cst_23 = arith.constant 0.000000e+00 : f32
      %32 = vector.broadcast %cst_23 : f32 to vector<64x128xf32>
      %33 = arith.maximumf %31, %32 : vector<64x128xf32>
      %34 = arith.truncf %33 : vector<64x128xf32> to vector<64x128xbf16>
      %c0_24 = arith.constant 0 : index
      %c0_25 = arith.constant 0 : index
      %35 = vector.load %arg10[%c0_24, %c0_25] : memref<128x128xbf16, #tpu.memory_space<vmem>>, vector<128x128xbf16>
      %cst_26 = arith.constant dense<0.000000e+00> : vector<64x128xf32>
      %36 = tpu.matmul %34, %35, %cst_26 {dimension_numbers = #tpu.dot_dimension_numbers<[1], [0], [0], [1], [0, 0, 1, 1], [], []>} : vector<64x128xbf16>, vector<128x128xbf16>, vector<64x128xf32> -> vector<64x128xf32>
      %c0_27 = arith.constant 0 : index
      %c0_28 = arith.constant 0 : index
      %37 = vector.load %arg11[%c0_27, %c0_28] : memref<1x128xf32, #tpu.memory_space<vmem>>, vector<1x128xf32>
      %38 = vector.broadcast %37 : vector<1x128xf32> to vector<64x128xf32>
      %39 = arith.addf %36, %38 : vector<64x128xf32>
      %c0_29 = arith.constant 0 : index
      %40 = memref.load %arg2[%c0_29] : memref<1xf32, #tpu.memory_space<smem>>
      %cst_30 = arith.constant 0.000000e+00 : f32
      %41 = vector.broadcast %cst_30 : f32 to vector<64x128xf32>
      %42 = arith.cmpf ogt, %39, %41 : vector<64x128xf32>
      %43 = vector.broadcast %40 : f32 to vector<64x128xf32>
      %44 = arith.mulf %43, %39 : vector<64x128xf32>
      %45 = arith.select %42, %39, %44 : vector<64x128xi1>, vector<64x128xf32>
      %c0_31 = arith.constant 0 : index
      %c0_32 = arith.constant 0 : index
      %46 = vector.load %arg12[%c0_31, %c0_32] : memref<64x128xf32, #tpu.memory_space<vmem>>, vector<64x128xf32>
      tpu.vector_store %arg12[%c0_31, %c0_32], %45 {strides = array<i32>} : memref<64x128xf32, #tpu.memory_space<vmem>>, vector<64x128xf32>,
    } else {
    }
    return
  }
  func.func @transform_0(%arg0: i32, %arg1: i32) -> i32 {
    %c0_i32 = arith.constant 0 : i32
    %c0_i32_0 = arith.constant 0 : i32
    return %c0_i32 : i32
  }
  func.func @transform_1(%arg0: i32, %arg1: i32) -> (i32, i32) {
    %c0_i32 = arith.constant 0 : i32
    return %arg0, %arg1 : i32, i32
  }
  func.func @transform_2(%arg0: i32, %arg1: i32) -> (i32, i32) {
    %c0_i32 = arith.constant 0 : i32
    %c0_i32_0 = arith.constant 0 : i32
    %c0_i32_1 = arith.constant 0 : i32
    return %c0_i32, %c0_i32_0 : i32, i32
  }
  func.func @transform_3(%arg0: i32, %arg1: i32) -> (i32, i32) {
    %c0_i32 = arith.constant 0 : i32
    %c0_i32_0 = arith.constant 0 : i32
    return %arg0, %c0_i32 : i32, i32
  }
  func.func @transform_4(%arg0: i32, %arg1: i32) -> (i32, i32) {
    %c0_i32 = arith.constant 0 : i32
    %c0_i32_0 = arith.constant 0 : i32
    %c0_i32_1 = arith.constant 0 : i32
    return %c0_i32, %c0_i32_0 : i32, i32
  }
  func.func @transform_5(%arg0: i32, %arg1: i32) -> (i32, i32) {
    %c0_i32 = arith.constant 0 : i32
    %c0_i32_0 = arith.constant 0 : i32
    %c0_i32_1 = arith.constant 0 : i32
    return %c0_i32, %c0_i32_0 : i32, i32
  }
  func.func @transform_6(%arg0: i32, %arg1: i32) -> (i32, i32) {
    %c0_i32 = arith.constant 0 : i32
    %c0_i32_0 = arith.constant 0 : i32
    %c0_i32_1 = arith.constant 0 : i32
    return %c0_i32, %c0_i32_0 : i32, i32
  }
  func.func @transform_7(%arg0: i32, %arg1: i32) -> (i32, i32) {
    %c0_i32 = arith.constant 0 : i32
    %c0_i32_0 = arith.constant 0 : i32
    %c0_i32_1 = arith.constant 0 : i32
    return %c0_i32, %c0_i32_0 : i32, i32
  }
  func.func @transform_8(%arg0: i32, %arg1: i32) -> (i32, i32) {
    %c0_i32 = arith.constant 0 : i32
    %c0_i32_0 = arith.constant 0 : i32
    %c0_i32_1 = arith.constant 0 : i32
    return %c0_i32, %c0_i32_0 : i32, i32
  }
  func.func @transform_9(%arg0: i32, %arg1: i32) -> (i32, i32) {
    %c0_i32 = arith.constant 0 : i32
    %c0_i32_0 = arith.constant 0 : i32
    %c0_i32_1 = arith.constant 0 : i32
    return %c0_i32, %c0_i32_0 : i32, i32
  }
  func.func @transform_10(%arg0: i32, %arg1: i32) -> (i32, i32) {
    %c0_i32 = arith.constant 0 : i32
    %c0_i32_0 = arith.constant 0 : i32
    return %arg0, %c0_i32 : i32, i32
  }
}

module attributes {stable_mosaic.version = 11 : i64} {
  func.func @_gcn_kernel(%arg0: i32, %arg1: i32, %arg2: memref<64x128xi8, #tpu.memory_space<vmem>>, %arg3: memref<128x128xbf16, #tpu.memory_space<vmem>>, %arg4: memref<128x128xbf16, #tpu.memory_space<vmem>>, %arg5: memref<64x128xbf16, #tpu.memory_space<vmem>>, %arg6: memref<64x128xf32, #tpu.memory_space<vmem>>) attributes {dimension_semantics = [#tpu.dimension_semantics<parallel>, #tpu.dimension_semantics<arbitrary>], iteration_bounds = array<i64: 2, 1>, scalar_prefetch = 0 : i64, scratch_operands = 1 : i64, tpu.core_type = #tpu.core_type<tc>, window_params = [{transform_indices = @transform_0, window_bounds = array<i64: 64, 128>}, {pipeline_mode = #tpu.pipeline_mode<synchronous>, transform_indices = @transform_1, window_bounds = array<i64: 128, 128>}, {pipeline_mode = #tpu.pipeline_mode<synchronous>, transform_indices = @transform_2, window_bounds = array<i64: 128, 128>}, {transform_indices = @transform_3, window_bounds = array<i64: 64, 128>}]} {
    %c0 = arith.constant 0 : index
    %c0_0 = arith.constant 0 : index
    %0 = vector.load %arg2[%c0, %c0_0] : memref<64x128xi8, #tpu.memory_space<vmem>>, vector<64x128xi8>
    %1 = arith.sitofp %0 : vector<64x128xi8> to vector<64x128xbf16>
    %c128_i32 = arith.constant 128 : i32
    %2 = arith.muli %arg1, %c128_i32 : i32
    %3 = tpu.assume_multiple %2, 128 : i32
    %4 = arith.index_cast %3 : i32 to index
    %c0_1 = arith.constant 0 : index
    %5 = vector.load %arg3[%4, %c0_1] : memref<128x128xbf16, #tpu.memory_space<vmem>>, vector<128x128xbf16>
    %cst = arith.constant dense<0.000000e+00> : vector<64x128xf32>
    %6 = tpu.matmul %1, %5, %cst {dimension_numbers = #tpu.dot_dimension_numbers<[1], [0], [0], [1], [0, 0, 1, 1], [], []>} : vector<64x128xbf16>, vector<128x128xbf16>, vector<64x128xf32> -> vector<64x128xf32>
    %c0_i32 = arith.constant 0 : i32
    %7 = arith.cmpi eq, %arg1, %c0_i32 : i32
    %8 = arith.extui %7 : i1 to i32
    %c0_i32_2 = arith.constant 0 : i32
    %9 = arith.cmpi ne, %8, %c0_i32_2 : i32
    scf.if %9 {
      %c0_7 = arith.constant 0 : index
      %c0_8 = arith.constant 0 : index
      %16 = vector.load %arg6[%c0_7, %c0_8] : memref<64x128xf32, #tpu.memory_space<vmem>>, vector<64x128xf32>
      tpu.vector_store %arg6[%c0_7, %c0_8], %6 {strides = array<i32>} : memref<64x128xf32, #tpu.memory_space<vmem>>, vector<64x128xf32>,
    } else {
    }
    %c0_i32_3 = arith.constant 0 : i32
    %10 = arith.cmpi sgt, %arg1, %c0_i32_3 : i32
    %11 = arith.extui %10 : i1 to i32
    %c0_i32_4 = arith.constant 0 : i32
    %12 = arith.cmpi ne, %11, %c0_i32_4 : i32
    scf.if %12 {
      %c0_7 = arith.constant 0 : index
      %c0_8 = arith.constant 0 : index
      %16 = vector.load %arg6[%c0_7, %c0_8] : memref<64x128xf32, #tpu.memory_space<vmem>>, vector<64x128xf32>
      %17 = arith.addf %16, %6 : vector<64x128xf32>
      %c0_9 = arith.constant 0 : index
      %c0_10 = arith.constant 0 : index
      %18 = vector.load %arg6[%c0_9, %c0_10] : memref<64x128xf32, #tpu.memory_space<vmem>>, vector<64x128xf32>
      tpu.vector_store %arg6[%c0_9, %c0_10], %17 {strides = array<i32>} : memref<64x128xf32, #tpu.memory_space<vmem>>, vector<64x128xf32>,
    } else {
    }
    %c0_i32_5 = arith.constant 0 : i32
    %13 = arith.cmpi eq, %arg1, %c0_i32_5 : i32
    %14 = arith.extui %13 : i1 to i32
    %c0_i32_6 = arith.constant 0 : i32
    %15 = arith.cmpi ne, %14, %c0_i32_6 : i32
    scf.if %15 {
      %c0_7 = arith.constant 0 : index
      %c0_8 = arith.constant 0 : index
      %16 = vector.load %arg6[%c0_7, %c0_8] : memref<64x128xf32, #tpu.memory_space<vmem>>, vector<64x128xf32>
      %17 = arith.truncf %16 : vector<64x128xf32> to vector<64x128xbf16>
      %c0_9 = arith.constant 0 : index
      %c0_10 = arith.constant 0 : index
      %18 = vector.load %arg4[%c0_9, %c0_10] : memref<128x128xbf16, #tpu.memory_space<vmem>>, vector<128x128xbf16>
      %cst_11 = arith.constant dense<0.000000e+00> : vector<64x128xf32>
      %19 = tpu.matmul %17, %18, %cst_11 {dimension_numbers = #tpu.dot_dimension_numbers<[1], [0], [0], [1], [0, 0, 1, 1], [], []>} : vector<64x128xbf16>, vector<128x128xbf16>, vector<64x128xf32> -> vector<64x128xf32>
      %cst_12 = arith.constant 0.000000e+00 : f32
      %20 = vector.broadcast %cst_12 : f32 to vector<64x128xf32>
      %21 = arith.maximumf %19, %20 : vector<64x128xf32>
      %22 = arith.truncf %21 : vector<64x128xf32> to vector<64x128xbf16>
      %c0_13 = arith.constant 0 : index
      %c0_14 = arith.constant 0 : index
      %23 = vector.load %arg5[%c0_13, %c0_14] : memref<64x128xbf16, #tpu.memory_space<vmem>>, vector<64x128xbf16>
      tpu.vector_store %arg5[%c0_13, %c0_14], %22 {strides = array<i32>} : memref<64x128xbf16, #tpu.memory_space<vmem>>, vector<64x128xbf16>,
    } else {
    }
    return
  }
  func.func @transform_0(%arg0: i32, %arg1: i32) -> (i32, i32) {
    %c0_i32 = arith.constant 0 : i32
    return %arg0, %arg1 : i32, i32
  }
  func.func @transform_1(%arg0: i32, %arg1: i32) -> (i32, i32) {
    %c0_i32 = arith.constant 0 : i32
    %c0_i32_0 = arith.constant 0 : i32
    %c0_i32_1 = arith.constant 0 : i32
    return %c0_i32, %c0_i32_0 : i32, i32
  }
  func.func @transform_2(%arg0: i32, %arg1: i32) -> (i32, i32) {
    %c0_i32 = arith.constant 0 : i32
    %c0_i32_0 = arith.constant 0 : i32
    %c0_i32_1 = arith.constant 0 : i32
    return %c0_i32, %c0_i32_0 : i32, i32
  }
  func.func @transform_3(%arg0: i32, %arg1: i32) -> (i32, i32) {
    %c0_i32 = arith.constant 0 : i32
    %c0_i32_0 = arith.constant 0 : i32
    return %arg0, %c0_i32 : i32, i32
  }
}

</mosaic_0001>

<llo_original>
// kernel: dgcn_forward.4
$region0: #{dgcn_forward.4}
  #allocation0 [shape = 'u32[]', space=smem, size = 0x4, offset = 0x4, fixed_abs, tag = 'smem constant byte address 0x4 - core index']
  #allocation1 [shape = 'u32[144,128]{1,0:T(1,128)}', space=vmem, size = 0x12000, scoped, tag = 'internal scratch']
  #allocation2 [shape = 'f32[64,128]{1,0:T(8,128)}', space=vmem, size = 0x8000, scoped, tag = 'scratch operand']
  %s0 = inlined_call_operand.vmem [shape: s8[128,128], index: 0, kind: input, shape index: {}]
  %s1 = inlined_call_operand.vmem [shape: bf16[128,128], index: 1, kind: input, shape index: {}]
  %s2 = inlined_call_operand.vmem [shape: bf16[128,128], index: 2, kind: input, shape index: {}]
  %s3 = inlined_call_operand.vmem [shape: bf16[128,128], index: 3, kind: output, shape index: {}]
  %s4 = sld [smem:[#allocation0]]
  $region57: #{dgcn_forward.4} parent=0
    _
  %s6 = ssub.s32 1, %s4
  %s7 = scalar_select 0, %s6, %s4
  loop: start=0, step=1, limit=4
  $region2: #{dgcn_forward.4} parent=0 // loop_pre_header
    _
  $region3: #{dgcn_forward.4} parent=0 // loop_header
    %s9 = sphi 0, %s13
    %p10 = scmp.ge.s32.totalorder %s9, 4
    %s16 = sphi 0, %s28
    %s17 = sphi 0, %s24
    %s18 = sphi 0, %s16
    %s19 = sphi 0, %s17
    %s20 = sphi 0, %s18
    %s21 = sphi 0, %s19
    %s33 = sphi 0, %s35
    %s36 = sphi 0, %s33
    %s37 = sphi 0, %s36
    %s53 = sphi 0, %s37
    %s57 = sphi 0, %s57
    %s59 = sphi 0, %s57
    %s60 = sphi 0, %s59
    %s74 = sphi 0, %s60
    %s78 = sphi 0, %s78
    %s80 = sphi 0, %s78
    %s81 = sphi 0, %s80
    %s95 = sphi 0, %s81
    %s101 = sphi 0, %s103
    %s104 = sphi 0, %s101
    %s105 = sphi 0, %s104
    %s121 = sphi 0, %s105
  $region4: #{dgcn_forward.4} parent=0 // loop_header_branch
    %12 = sbr.rel (%p10) target = $region8
  $region5: #{dgcn_forward.4} parent=0 // loop_body
    %s14 = ssub.s32 %s9, 1
    %s15 = ssub.s32 %s9, 2
    %s22 = sadd.s32 1, %s17
    %p23 = scmp.ge.s32.totalorder %s22, 1
    %s24 = scalar_select %p23, 0, %s22
    %s25 = sadd.s32 1, %s16
    %s26 = scalar_select %p23, %s25, %s16
    %p27 = scmp.ge.s32.totalorder %s26, 2
    %s28 = scalar_select %p27, 0, %s26
    %s29 = ssub.s32 %s16, %s28
    %s30 = ssub.s32 %s17, %s24
    %s31 = sor.u32 %s29, %s30
    %p32 = scmp.eq.s32.totalorder %s31, 0
    %s34 = sadd.s32 %s33, 1
    %s35 = scalar_select %p32, %s33, %s34
    %p38 = pneg %p32
    %p39 = scmp.eq.s32.totalorder %s9, 1
    %p40 = por %p38, %p39
    %p41 = scmp.ne.s32.totalorder %s33, %s36
    %p42 = scmp.eq.s32.totalorder %s9, 0
    %p43 = por %p41, %p42
    %p44 = scmp.ne.s32.totalorder %s33, %s36
    %p45 = scmp.eq.s32.totalorder %s14, 1
    %p46 = por %p44, %p45
    %p47 = scmp.ne.s32.totalorder %s36, %s37
    %p48 = scmp.eq.s32.totalorder %s14, 0
    %p49 = por %p47, %p48
    %p50 = scmp.ne.s32.totalorder %s36, %s37
    %p51 = scmp.eq.s32.totalorder %s15, 1
    %p52 = por %p50, %p51
    %p54 = scmp.ne.s32.totalorder %s37, %s53
    %p55 = scmp.eq.s32.totalorder %s15, 0
    %p56 = por %p54, %p55
    %s58 = sadd.s32 %s57, 1
    %p61 = scmp.eq.s32.totalorder %s9, 1
    %p62 = scmp.ne.s32.totalorder %s57, %s59
    %p63 = scmp.eq.s32.totalorder %s9, 0
    %p64 = por %p62, %p63
    %p65 = scmp.ne.s32.totalorder %s57, %s59
    %p66 = scmp.eq.s32.totalorder %s14, 1
    %p67 = por %p65, %p66
    %p68 = scmp.ne.s32.totalorder %s59, %s60
    %p69 = scmp.eq.s32.totalorder %s14, 0
    %p70 = por %p68, %p69
    %p71 = scmp.ne.s32.totalorder %s59, %s60
    %p72 = scmp.eq.s32.totalorder %s15, 1
    %p73 = por %p71, %p72
    %p75 = scmp.ne.s32.totalorder %s60, %s74
    %p76 = scmp.eq.s32.totalorder %s15, 0
    %p77 = por %p75, %p76
    %s79 = sadd.s32 %s78, 1
    %p82 = scmp.eq.s32.totalorder %s9, 1
    %p83 = scmp.ne.s32.totalorder %s78, %s80
    %p84 = scmp.eq.s32.totalorder %s9, 0
    %p85 = por %p83, %p84
    %p86 = scmp.ne.s32.totalorder %s78, %s80
    %p87 = scmp.eq.s32.totalorder %s14, 1
    %p88 = por %p86, %p87
    %p89 = scmp.ne.s32.totalorder %s80, %s81
    %p90 = scmp.eq.s32.totalorder %s14, 0
    %p91 = por %p89, %p90
    %p92 = scmp.ne.s32.totalorder %s80, %s81
    %p93 = scmp.eq.s32.totalorder %s15, 1
    %p94 = por %p92, %p93
    %p96 = scmp.ne.s32.totalorder %s81, %s95
    %p97 = scmp.eq.s32.totalorder %s15, 0
    %p98 = por %p96, %p97
    %s99 = ssub.s32 %s16, %s28
    %p100 = scmp.eq.s32.totalorder %s99, 0
    %s102 = sadd.s32 %s101, 1
    %s103 = scalar_select %p100, %s101, %s102
    %p106 = pneg %p100
    %p107 = scmp.eq.s32.totalorder %s9, 1
    %p108 = por %p106, %p107
    %p109 = scmp.ne.s32.totalorder %s101, %s104
    %p110 = scmp.eq.s32.totalorder %s9, 0
    %p111 = por %p109, %p110
    %p112 = scmp.ne.s32.totalorder %s101, %s104
    %p113 = scmp.eq.s32.totalorder %s14, 1
    %p114 = por %p112, %p113
    %p115 = scmp.ne.s32.totalorder %s104, %s105
    %p116 = scmp.eq.s32.totalorder %s14, 0
    %p117 = por %p115, %p116
    %p118 = scmp.ne.s32.totalorder %s104, %s105
    %p119 = scmp.eq.s32.totalorder %s15, 1
    %p120 = por %p118, %p119
    %p122 = scmp.ne.s32.totalorder %s105, %s121
    %p123 = scmp.eq.s32.totalorder %s15, 0
    %p124 = por %p122, %p123
    %p125 = scmp.le.s32.totalorder 1, %s9
    %p126 = scmp.lt.s32.totalorder %s9, 3
    %p127 = pnand %p125, %p126
    %p128 = pneg %p127
    // Predicated region
    $region9: #{dgcn_forward.4} parent=5 // pred_check
      _
    $region10: #{dgcn_forward.4} parent=5 // pred_check_branch
      %130 = sbr.rel (%p127) target = $region12
    $region11: #{dgcn_forward.4} parent=5 // pred_region
      %s131 = ssub.s32 %s9, 1
      // Predicated region
      $region13: #{dgcn_forward.4} parent=11 // pred_check
        %p132 = pneg %p70
      $region14: #{dgcn_forward.4} parent=11 // pred_check_branch
        %134 = sbr.rel (%p132) target = $region16
      $region15: #{dgcn_forward.4} parent=11 // pred_region
        _
      $region16: #{dgcn_forward.4} parent=11 // pred_fallthru
        _
      // Predicated region
      $region17: #{dgcn_forward.4} parent=11 // pred_check
        %p135 = pneg %p91
      $region18: #{dgcn_forward.4} parent=11 // pred_check_branch
        %137 = sbr.rel (%p135) target = $region20
      $region19: #{dgcn_forward.4} parent=11 // pred_region
        _
      $region20: #{dgcn_forward.4} parent=11 // pred_fallthru
        _
    $region12: #{dgcn_forward.4} parent=5 // pred_fallthru
      _
    %p138 = scmp.lt.s32.totalorder %s9, 2
    // Predicated region
    $region21: #{dgcn_forward.4} parent=5 // pred_check
      %p139 = pneg %p138
    $region22: #{dgcn_forward.4} parent=5 // pred_check_branch
      %141 = sbr.rel (%p139) target = $region24
    $region23: #{dgcn_forward.4} parent=5 // pred_region
      // Predicated region
      $region25: #{dgcn_forward.4} parent=23 // pred_check
        %p142 = pneg %p43
      $region26: #{dgcn_forward.4} parent=23 // pred_check_branch
        %144 = sbr.rel (%p142) target = $region28
      $region27: #{dgcn_forward.4} parent=23 // pred_region
        %s145 = smul.u32 2, %s16
        %p146 = scmp.lt.s32.totalorder %s145, 3
        %s147 = scalar_select %p146, %s145, 3
        %p148 = scmp.lt.s32.totalorder %s17, 0
        %s149 = scalar_select %p148, %s17, 0
        %s150 = sadd.s32 %s149, %s147
        %s151 = smul.addr %s150, 8
        %s152 = scalar_lea.vmem %s0, %s151
        %s153 = smul.u32 2, %s16
      $region28: #{dgcn_forward.4} parent=23 // pred_fallthru
        _
    $region24: #{dgcn_forward.4} parent=5 // pred_fallthru
      _
    %p154 = scmp.le.s32.totalorder 1, %s9
    %p155 = scmp.lt.s32.totalorder %s9, 3
    %p156 = pnand %p154, %p155
    %p157 = pneg %p156
    // Predicated region
    $region29: #{dgcn_forward.4} parent=5 // pred_check
      _
    $region30: #{dgcn_forward.4} parent=5 // pred_check_branch
      %159 = sbr.rel (%p156) target = $region32
    $region31: #{dgcn_forward.4} parent=5 // pred_region
      %s160 = ssub.s32 %s9, 1
      %s161 = smul.u32 2, %s18
      %p162 = scmp.lt.s32.totalorder %s161, 3
      %s163 = scalar_select %p162, %s161, 3
      %p164 = scmp.lt.s32.totalorder %s19, 0
      %s165 = scalar_select %p164, %s19, 0
      %s166 = sadd.s32 %s165, %s163
      %s167 = smul.addr %s166, 8
      %s168 = scalar_lea.vmem %s0, %s167
      %p169 = pneg %p49
      %p170 = pneg %p46
      %p171 = pneg %p70
      %p172 = pneg %p67
      %p173 = pneg %p91
      %p174 = pneg %p88
      %p175 = pneg %p117
      %p176 = pneg %p114
      %s177 = smul.u32 8, %s18
      %p178 = scmp.lt.s32.totalorder %s177, 15
      %s179 = scalar_select %p178, %s177, 15
      %s180 = smul.addr %s179, 4
      %s181 = scalar_lea.vmem %s3, %s180
      %s182 = smul.u32 2, %s18
      %p183 = scmp.lt.s32.totalorder %s182, 3
      %s184 = scalar_select %p183, %s182, 3
      %p185 = scmp.lt.s32.totalorder %s19, 0
      %s186 = scalar_select %p185, %s19, 0
      %s187 = sadd.s32 %s186, %s184
      %s188 = smul.addr %s187, 8
      %s189 = scalar_lea.vmem %s0, %s188
      %s190 = smul.u32 2, %s18
      %s191 = smul.u32 8, %s18
      %p192 = scmp.lt.s32.totalorder %s191, 15
      %s193 = scalar_select %p192, %s191, 15
      %s194 = smul.addr %s193, 4
      %s195 = scalar_lea.vmem %s3, %s194
      %s196 = smul.u32 8, %s18
      %v198 = vld [vmem:[%s189] sm:$0xff]
      %v199 = vld [vmem:[%s189 + $0x8] sm:$0xff]
      %v200 = vunpack.c.l.s8.bf16 %v198
      %v201 = vunpack.c.h.s8.bf16 %v198
      %v202 = vunpack.c.l.s8.bf16 %v199
      %v203 = vunpack.c.h.s8.bf16 %v199
      %s204 = smul.u32 %s19, 128
      %s205 = sshra.s32 %s204, 3
      %s206 = sand.u32 %s204, 7
      %s207 = smul.addr %s205, 4
      %s208 = scalar_lea.vmem %s1, %s207
      %v209 = vld [vmem:[%s208] sm:$0xf]
      %v210 = vld [vmem:[%s208 + $0x4] sm:$0xf]
      %v211 = vld [vmem:[%s208 + $0x8] sm:$0xf]
      %v212 = vld [vmem:[%s208 + $0xc] sm:$0xf]
      %v213 = vld [vmem:[%s208 + $0x10] sm:$0xf]
      %v214 = vld [vmem:[%s208 + $0x14] sm:$0xf]
      %v215 = vld [vmem:[%s208 + $0x18] sm:$0xf]
      %v216 = vld [vmem:[%s208 + $0x1c] sm:$0xf]
      %v217 = vld [vmem:[%s208 + $0x20] sm:$0xf]
      %v218 = vld [vmem:[%s208 + $0x24] sm:$0xf]
      %v219 = vld [vmem:[%s208 + $0x28] sm:$0xf]
      %v220 = vld [vmem:[%s208 + $0x2c] sm:$0xf]
      %v221 = vld [vmem:[%s208 + $0x30] sm:$0xf]
      %v222 = vld [vmem:[%s208 + $0x34] sm:$0xf]
      %v223 = vld [vmem:[%s208 + $0x38] sm:$0xf]
      %v224 = vld [vmem:[%s208 + $0x3c] sm:$0xf]
      %v241 = vunpack.c.l.b16 %v209
      %v242 = vunpack.c.l.b16 %v210
      %v243 = vunpack.c.l.b16 %v211
      %v244 = vunpack.c.l.b16 %v212
      %v245 = vunpack.c.l.b16 %v213
      %v246 = vunpack.c.l.b16 %v214
      %v247 = vunpack.c.l.b16 %v215
      %v248 = vunpack.c.l.b16 %v216
      %v249 = vunpack.c.l.b16 %v217
      %v250 = vunpack.c.l.b16 %v218
      %v251 = vunpack.c.l.b16 %v219
      %v252 = vunpack.c.l.b16 %v220
      %v253 = vunpack.c.l.b16 %v221
      %v254 = vunpack.c.l.b16 %v222
      %v255 = vunpack.c.l.b16 %v223
      %v256 = vunpack.c.l.b16 %v224
      %v257 = vpack.c.b16 %v242, %v241
      %v258 = vpack.c.b16 %v244, %v243
      %v259 = vpack.c.b16 %v246, %v245
      %v260 = vpack.c.b16 %v248, %v247
      %v261 = vpack.c.b16 %v250, %v249
      %v262 = vpack.c.b16 %v252, %v251
      %v263 = vpack.c.b16 %v254, %v253
      %v264 = vpack.c.b16 %v256, %v255
      %273 = vmatprep.subr.bf16.mxu0 0
      %274 = vmatpush1.bf16.msra.mxu0 %v257
      %275 = vmatprep.subr.bf16.mxu0 0
      %276 = vmatpush1.bf16.msra.mxu0 %v258
      %277 = vmatprep.subr.bf16.mxu0 0
      %278 = vmatpush1.bf16.msra.mxu0 %v259
      %279 = vmatprep.subr.bf16.mxu0 0
      %280 = vmatpush1.bf16.msra.mxu0 %v260
      %281 = vmatprep.subr.bf16.mxu0 0
      %282 = vmatpush1.bf16.msra.mxu0 %v261
      %283 = vmatprep.subr.bf16.mxu0 0
      %284 = vmatpush1.bf16.msra.mxu0 %v262
      %285 = vmatprep.subr.bf16.mxu0 0
      %286 = vmatpush1.bf16.msra.mxu0 %v263
      %287 = vmatprep.subr.bf16.mxu0 0
      %288 = vmatpush1.bf16.msra.mxu0 %v264
      %289 = vmatprep.subr.bf16.mxu0 0
      %290 = vmatpush1.bf16.msra.mxu0 0
      %291 = vmatprep.subr.bf16.mxu0 0
      %292 = vmatpush1.bf16.msra.mxu0 0
      %293 = vmatprep.subr.bf16.mxu0 0
      %294 = vmatpush1.bf16.msra.mxu0 0
      %295 = vmatprep.subr.bf16.mxu0 0
      %296 = vmatpush1.bf16.msra.mxu0 0
      %297 = vmatprep.subr.bf16.mxu0 0
      %298 = vmatpush1.bf16.msra.mxu0 0
      %299 = vmatprep.subr.bf16.mxu0 0
      %300 = vmatpush1.bf16.msra.mxu0 0
      %301 = vmatprep.subr.bf16.mxu0 0
      %302 = vmatpush1.bf16.msra.mxu0 0
      %303 = vmatprep.subr.bf16.mxu0 0
      %304 = vmatpush1.bf16.msra.mxu0 0
      %305 = vmatprep.mubr.bf16.mxu0 0
      %306 = vmatmul.mubr.bf16.gmra.mrb[0].mxu0 %v200
      %v307 = vpop.f32.mrb[0].mxu0
      %v308 = vadd.f32 0.0, %v307
      %v309 = vpop.f32.mrb[0].mxu0
      %v310 = vpop.f32.mrb[0].mxu0
      %v311 = vadd.f32 0.0, %v310
      %v312 = vpop.f32.mrb[0].mxu0
      %313 = vmatprep.mubr.bf16.mxu0 0
      %314 = vmatmul.mubr.bf16.gmra.mrb[0].mxu0 %v201
      %v315 = vpop.f32.mrb[0].mxu0
      %v316 = vadd.f32 0.0, %v315
      %v317 = vpop.f32.mrb[0].mxu0
      %v318 = vpop.f32.mrb[0].mxu0
      %v319 = vadd.f32 0.0, %v318
      %v320 = vpop.f32.mrb[0].mxu0
      %321 = vmatprep.mubr.bf16.mxu0 0
      %322 = vmatmul.mubr.bf16.gmra.mrb[0].mxu0 %v202
      %v323 = vpop.f32.mrb[0].mxu0
      %v324 = vadd.f32 0.0, %v323
      %v325 = vpop.f32.mrb[0].mxu0
      %v326 = vpop.f32.mrb[0].mxu0
      %v327 = vadd.f32 0.0, %v326
      %v328 = vpop.f32.mrb[0].mxu0
      %329 = vmatprep.mubr.bf16.mxu0 0
      %330 = vmatmul.mubr.bf16.gmra.mrb[0].mxu0 %v203
      %v331 = vpop.f32.mrb[0].mxu0
      %v332 = vadd.f32 0.0, %v331
      %v333 = vpop.f32.mrb[0].mxu0
      %v334 = vpop.f32.mrb[0].mxu0
      %v335 = vadd.f32 0.0, %v334
      %v336 = vpop.f32.mrb[0].mxu0
      %337 = vdwg.mxu0
      %p338 = scmp.eq.s32.totalorder %s19, 0
      // Predicated region
      $region33: #{dgcn_forward.4} parent=31 // pred_check
        %p339 = pneg %p338
      $region34: #{dgcn_forward.4} parent=31 // pred_check_branch
        %341 = sbr.rel (%p339) target = $region36
      $region35: #{dgcn_forward.4} parent=31 // pred_region
        %342 = vst [vmem:[#allocation2] sm:$0xff] %v308
        %343 = vst [vmem:[#allocation2 + $0x8] sm:$0xff] %v311
        %344 = vst [vmem:[#allocation2 + $0x10] sm:$0xff] %v316
        %345 = vst [vmem:[#allocation2 + $0x18] sm:$0xff] %v319
        %346 = vst [vmem:[#allocation2 + $0x20] sm:$0xff] %v324
        %347 = vst [vmem:[#allocation2 + $0x28] sm:$0xff] %v327
        %348 = vst [vmem:[#allocation2 + $0x30] sm:$0xff] %v332
        %349 = vst [vmem:[#allocation2 + $0x38] sm:$0xff] %v335
      $region36: #{dgcn_forward.4} parent=31 // pred_fallthru
        _
      %p350 = scmp.gt.s32.totalorder %s19, 0
      // Predicated region
      $region37: #{dgcn_forward.4} parent=31 // pred_check
        %p351 = pneg %p350
      $region38: #{dgcn_forward.4} parent=31 // pred_check_branch
        %353 = sbr.rel (%p351) target = $region40
      $region39: #{dgcn_forward.4} parent=31 // pred_region
        %v354 = vld [vmem:[#allocation2] sm:$0xff]
        %v355 = vld [vmem:[#allocation2 + $0x8] sm:$0xff]
        %v356 = vld [vmem:[#allocation2 + $0x10] sm:$0xff]
        %v357 = vld [vmem:[#allocation2 + $0x18] sm:$0xff]
        %v358 = vld [vmem:[#allocation2 + $0x20] sm:$0xff]
        %v359 = vld [vmem:[#allocation2 + $0x28] sm:$0xff]
        %v360 = vld [vmem:[#allocation2 + $0x30] sm:$0xff]
        %v361 = vld [vmem:[#allocation2 + $0x38] sm:$0xff]
        %v362 = vadd.f32 %v354, %v308
        %v363 = vadd.f32 %v355, %v311
        %v364 = vadd.f32 %v356, %v316
        %v365 = vadd.f32 %v357, %v319
        %v366 = vadd.f32 %v358, %v324
        %v367 = vadd.f32 %v359, %v327
        %v368 = vadd.f32 %v360, %v332
        %v369 = vadd.f32 %v361, %v335
        %370 = vst [vmem:[#allocation2] sm:$0xff] %v362
        %371 = vst [vmem:[#allocation2 + $0x8] sm:$0xff] %v363
        %372 = vst [vmem:[#allocation2 + $0x10] sm:$0xff] %v364
        %373 = vst [vmem:[#allocation2 + $0x18] sm:$0xff] %v365
        %374 = vst [vmem:[#allocation2 + $0x20] sm:$0xff] %v366
        %375 = vst [vmem:[#allocation2 + $0x28] sm:$0xff] %v367
        %376 = vst [vmem:[#allocation2 + $0x30] sm:$0xff] %v368
        %377 = vst [vmem:[#allocation2 + $0x38] sm:$0xff] %v369
      $region40: #{dgcn_forward.4} parent=31 // pred_fallthru
        _
      // Predicated region
      $region41: #{dgcn_forward.4} parent=31 // pred_check
        %p378 = pneg %p338
      $region42: #{dgcn_forward.4} parent=31 // pred_check_branch
        %380 = sbr.rel (%p378) target = $region44
      $region43: #{dgcn_forward.4} parent=31 // pred_region
        %v381 = vld [vmem:[#allocation2] sm:$0xff]
        %v382 = vld [vmem:[#allocation2 + $0x8] sm:$0xff]
        %v383 = vld [vmem:[#allocation2 + $0x10] sm:$0xff]
        %v384 = vld [vmem:[#allocation2 + $0x18] sm:$0xff]
        %v385 = vld [vmem:[#allocation2 + $0x20] sm:$0xff]
        %v386 = vld [vmem:[#allocation2 + $0x28] sm:$0xff]
        %v387 = vld [vmem:[#allocation2 + $0x30] sm:$0xff]
        %v388 = vld [vmem:[#allocation2 + $0x38] sm:$0xff]
        %v389 = vpack.c.bf16 %v382, %v381
        %v390 = vpack.c.bf16 %v384, %v383
        %v391 = vpack.c.bf16 %v386, %v385
        %v392 = vpack.c.bf16 %v388, %v387
        %v393 = vld [vmem:[%s2] sm:$0xf]
        %v394 = vld [vmem:[%s2 + $0x4] sm:$0xf]
        %v395 = vld [vmem:[%s2 + $0x8] sm:$0xf]
        %v396 = vld [vmem:[%s2 + $0xc] sm:$0xf]
        %v397 = vld [vmem:[%s2 + $0x10] sm:$0xf]
        %v398 = vld [vmem:[%s2 + $0x14] sm:$0xf]
        %v399 = vld [vmem:[%s2 + $0x18] sm:$0xf]
        %v400 = vld [vmem:[%s2 + $0x1c] sm:$0xf]
        %v401 = vld [vmem:[%s2 + $0x20] sm:$0xf]
        %v402 = vld [vmem:[%s2 + $0x24] sm:$0xf]
        %v403 = vld [vmem:[%s2 + $0x28] sm:$0xf]
        %v404 = vld [vmem:[%s2 + $0x2c] sm:$0xf]
        %v405 = vld [vmem:[%s2 + $0x30] sm:$0xf]
        %v406 = vld [vmem:[%s2 + $0x34] sm:$0xf]
        %v407 = vld [vmem:[%s2 + $0x38] sm:$0xf]
        %v408 = vld [vmem:[%s2 + $0x3c] sm:$0xf]
        %v425 = vunpack.c.l.b16 %v393
        %v426 = vunpack.c.l.b16 %v394
        %v427 = vunpack.c.l.b16 %v395
        %v428 = vunpack.c.l.b16 %v396
        %v429 = vunpack.c.l.b16 %v397
        %v430 = vunpack.c.l.b16 %v398
        %v431 = vunpack.c.l.b16 %v399
        %v432 = vunpack.c.l.b16 %v400
        %v433 = vunpack.c.l.b16 %v401
        %v434 = vunpack.c.l.b16 %v402
        %v435 = vunpack.c.l.b16 %v403
        %v436 = vunpack.c.l.b16 %v404
        %v437 = vunpack.c.l.b16 %v405
        %v438 = vunpack.c.l.b16 %v406
        %v439 = vunpack.c.l.b16 %v407
        %v440 = vunpack.c.l.b16 %v408
        %v441 = vpack.c.b16 %v426, %v425
        %v442 = vpack.c.b16 %v428, %v427
        %v443 = vpack.c.b16 %v430, %v429
        %v444 = vpack.c.b16 %v432, %v431
        %v445 = vpack.c.b16 %v434, %v433
        %v446 = vpack.c.b16 %v436, %v435
        %v447 = vpack.c.b16 %v438, %v437
        %v448 = vpack.c.b16 %v440, %v439
        %457 = vmatprep.subr.bf16.mxu0 0
        %458 = vmatpush1.bf16.msra.mxu0 %v441
        %459 = vmatprep.subr.bf16.mxu0 0
        %460 = vmatpush1.bf16.msra.mxu0 %v442
        %461 = vmatprep.subr.bf16.mxu0 0
        %462 = vmatpush1.bf16.msra.mxu0 %v443
        %463 = vmatprep.subr.bf16.mxu0 0
        %464 = vmatpush1.bf16.msra.mxu0 %v444
        %465 = vmatprep.subr.bf16.mxu0 0
        %466 = vmatpush1.bf16.msra.mxu0 %v445
        %467 = vmatprep.subr.bf16.mxu0 0
        %468 = vmatpush1.bf16.msra.mxu0 %v446
        %469 = vmatprep.subr.bf16.mxu0 0
        %470 = vmatpush1.bf16.msra.mxu0 %v447
        %471 = vmatprep.subr.bf16.mxu0 0
        %472 = vmatpush1.bf16.msra.mxu0 %v448
        %473 = vmatprep.subr.bf16.mxu0 0
        %474 = vmatpush1.bf16.msra.mxu0 0
        %475 = vmatprep.subr.bf16.mxu0 0
        %476 = vmatpush1.bf16.msra.mxu0 0
        %477 = vmatprep.subr.bf16.mxu0 0
        %478 = vmatpush1.bf16.msra.mxu0 0
        %479 = vmatprep.subr.bf16.mxu0 0
        %480 = vmatpush1.bf16.msra.mxu0 0
        %481 = vmatprep.subr.bf16.mxu0 0
        %482 = vmatpush1.bf16.msra.mxu0 0
        %483 = vmatprep.subr.bf16.mxu0 0
        %484 = vmatpush1.bf16.msra.mxu0 0
        %485 = vmatprep.subr.bf16.mxu0 0
        %486 = vmatpush1.bf16.msra.mxu0 0
        %487 = vmatprep.subr.bf16.mxu0 0
        %488 = vmatpush1.bf16.msra.mxu0 0
        %489 = vmatprep.mubr.bf16.mxu0 0
        %490 = vmatmul.mubr.bf16.gmra.mrb[0].mxu0 %v389
        %v491 = vpop.f32.mrb[0].mxu0
        %v492 = vadd.f32 0.0, %v491
        %v493 = vpop.f32.mrb[0].mxu0
        %v494 = vpop.f32.mrb[0].mxu0
        %v495 = vadd.f32 0.0, %v494
        %v496 = vpop.f32.mrb[0].mxu0
        %497 = vmatprep.mubr.bf16.mxu0 0
        %498 = vmatmul.mubr.bf16.gmra.mrb[0].mxu0 %v390
        %v499 = vpop.f32.mrb[0].mxu0
        %v500 = vadd.f32 0.0, %v499
        %v501 = vpop.f32.mrb[0].mxu0
        %v502 = vpop.f32.mrb[0].mxu0
        %v503 = vadd.f32 0.0, %v502
        %v504 = vpop.f32.mrb[0].mxu0
        %505 = vmatprep.mubr.bf16.mxu0 0
        %506 = vmatmul.mubr.bf16.gmra.mrb[0].mxu0 %v391
        %v507 = vpop.f32.mrb[0].mxu0
        %v508 = vadd.f32 0.0, %v507
        %v509 = vpop.f32.mrb[0].mxu0
        %v510 = vpop.f32.mrb[0].mxu0
        %v511 = vadd.f32 0.0, %v510
        %v512 = vpop.f32.mrb[0].mxu0
        %513 = vmatprep.mubr.bf16.mxu0 0
        %514 = vmatmul.mubr.bf16.gmra.mrb[0].mxu0 %v392
        %v515 = vpop.f32.mrb[0].mxu0
        %v516 = vadd.f32 0.0, %v515
        %v517 = vpop.f32.mrb[0].mxu0
        %v518 = vpop.f32.mrb[0].mxu0
        %v519 = vadd.f32 0.0, %v518
        %v520 = vpop.f32.mrb[0].mxu0
        %521 = vdwg.mxu0
        %v522 = vmax.f32 %v492, 0.0
        %v523 = vmax.f32 %v495, 0.0
        %v524 = vmax.f32 %v500, 0.0
        %v525 = vmax.f32 %v503, 0.0
        %v526 = vmax.f32 %v508, 0.0
        %v527 = vmax.f32 %v511, 0.0
        %v528 = vmax.f32 %v516, 0.0
        %v529 = vmax.f32 %v519, 0.0
        %v530 = vpack.c.bf16 %v523, %v522
        %v531 = vpack.c.bf16 %v525, %v524
        %v532 = vpack.c.bf16 %v527, %v526
        %v533 = vpack.c.bf16 %v529, %v528
        %v538 = vunpack.c.l.b16 %v530
        %v539 = vunpack.c.h.b16 %v530
        %v540 = vunpack.c.l.b16 %v531
        %v541 = vunpack.c.h.b16 %v531
        %v542 = vunpack.c.l.b16 %v532
        %v543 = vunpack.c.h.b16 %v532
        %v544 = vunpack.c.l.b16 %v533
        %v545 = vunpack.c.h.b16 %v533
        %v546 = vpack.c.b16 %v538, %v538
        %v547 = vpack.c.b16 %v539, %v539
        %v548 = vpack.c.b16 %v540, %v540
        %v549 = vpack.c.b16 %v541, %v541
        %v550 = vpack.c.b16 %v542, %v542
        %v551 = vpack.c.b16 %v543, %v543
        %v552 = vpack.c.b16 %v544, %v544
        %v553 = vpack.c.b16 %v545, %v545
        %562 = vst [vmem:[%s195] sm:$0xf] %v546
        %563 = vst [vmem:[%s195 + $0x4] sm:$0xf] %v547
        %564 = vst [vmem:[%s195 + $0x8] sm:$0xf] %v548
        %565 = vst [vmem:[%s195 + $0xc] sm:$0xf] %v549
        %566 = vst [vmem:[%s195 + $0x10] sm:$0xf] %v550
        %567 = vst [vmem:[%s195 + $0x14] sm:$0xf] %v551
        %568 = vst [vmem:[%s195 + $0x18] sm:$0xf] %v552
        %569 = vst [vmem:[%s195 + $0x1c] sm:$0xf] %v553
      $region44: #{dgcn_forward.4} parent=31 // pred_fallthru
        _
      %s570 = smul.u32 8, %s18
      %p571 = scmp.lt.s32.totalorder %s570, 15
      %s572 = scalar_select %p571, %s570, 15
      %s573 = smul.addr %s572, 4
      %s574 = scalar_lea.vmem %s3, %s573
      // Predicated region
      $region45: #{dgcn_forward.4} parent=31 // pred_check
        %p575 = pneg %p114
      $region46: #{dgcn_forward.4} parent=31 // pred_check_branch
        %577 = sbr.rel (%p575) target = $region48
      $region47: #{dgcn_forward.4} parent=31 // pred_region
        %s578 = smul.u32 8, %s18
      $region48: #{dgcn_forward.4} parent=31 // pred_fallthru
        _
    $region32: #{dgcn_forward.4} parent=5 // pred_fallthru
      _
    %p579 = scmp.le.s32.totalorder 2, %s9
    // Predicated region
    $region49: #{dgcn_forward.4} parent=5 // pred_check
      %p580 = pneg %p579
    $region50: #{dgcn_forward.4} parent=5 // pred_check_branch
      %582 = sbr.rel (%p580) target = $region52
    $region51: #{dgcn_forward.4} parent=5 // pred_region
      %s583 = ssub.s32 %s9, 2
      // Predicated region
      $region53: #{dgcn_forward.4} parent=51 // pred_check
        %p584 = pneg %p120
      $region54: #{dgcn_forward.4} parent=51 // pred_check_branch
        %586 = sbr.rel (%p584) target = $region56
      $region55: #{dgcn_forward.4} parent=51 // pred_region
        %s587 = smul.u32 8, %s20
        %p588 = scmp.lt.s32.totalorder %s587, 15
        %s589 = scalar_select %p588, %s587, 15
        %s590 = smul.addr %s589, 4
        %s591 = scalar_lea.vmem %s3, %s590
      $region56: #{dgcn_forward.4} parent=51 // pred_fallthru
        _
    $region52: #{dgcn_forward.4} parent=5 // pred_fallthru
      _
  $region6: #{dgcn_forward.4} parent=0 // loop_footer
    %s13 = sadd.s32 1, %s9
  $region7: #{dgcn_forward.4} parent=0 // loop_footer_branch
    %8 = sbr.rel target = $region3
  $region8: #{dgcn_forward.4} parent=0 // loop_exit
    _

// kernel: dgcn_forward.6
$region0: #{dgcn_forward.6}
  #allocation0 [shape = 'u32[]', space=smem, size = 0x4, offset = 0x4, fixed_abs, tag = 'smem constant byte address 0x4 - core index']
  #allocation1 [shape = 'u32[144,128]{1,0:T(1,128)}', space=vmem, size = 0x12000, scoped, tag = 'internal scratch']
  #allocation2 [shape = 'f32[64,128]{1,0:T(8,128)}', space=vmem, size = 0x8000, scoped, tag = 'scratch operand']
  #allocation3 [shape = 'f32[1]{0:T(128)S(6)}', space=smem, size = 0x200, scoped, tag = 'scoped memory for dgcn_forward.6']
  %s0 = inlined_call_operand.<no memory space> [shape: f32[1], index: 0, kind: input, shape index: {}]
  %s1 = inlined_call_operand.vmem [shape: s8[128,128], index: 1, kind: input, shape index: {}]
  %s2 = inlined_call_operand.vmem [shape: bf16[128,128], index: 2, kind: input, shape index: {}]
  %s3 = inlined_call_operand.vmem [shape: bf16[128,128], index: 3, kind: input, shape index: {}]
  %s4 = inlined_call_operand.vmem [shape: bf16[128,128], index: 4, kind: input, shape index: {}]
  %s5 = inlined_call_operand.vmem [shape: bf16[128,128], index: 5, kind: input, shape index: {}]
  %s6 = inlined_call_operand.vmem [shape: bf16[128,128], index: 6, kind: input, shape index: {}]
  %s7 = inlined_call_operand.vmem [shape: f32[1,128], index: 7, kind: input, shape index: {}]
  %s8 = inlined_call_operand.vmem [shape: bf16[128,128], index: 8, kind: input, shape index: {}]
  %s9 = inlined_call_operand.vmem [shape: f32[1,128], index: 9, kind: input, shape index: {}]
  %s10 = inlined_call_operand.vmem [shape: f32[128,128], index: 10, kind: output, shape index: {}]
  %s11 = sld [smem:[#allocation0]]
  $region85: #{dgcn_forward.6} parent=0
    _
  %s13 = ssub.s32 1, %s11
  %s14 = scalar_select 0, %s13, %s11
  %15 = sst [smem:[#allocation3]] %s0
  loop: start=0, step=1, limit=4
  $region2: #{dgcn_forward.6} parent=0 // loop_pre_header
    _
  $region3: #{dgcn_forward.6} parent=0 // loop_header
    %s17 = sphi 0, %s21
    %p18 = scmp.ge.s32.totalorder %s17, 4
    %s24 = sphi 0, %s36
    %s25 = sphi 0, %s32
    %s26 = sphi 0, %s24
    %s27 = sphi 0, %s25
    %s28 = sphi 0, %s26
    %s29 = sphi 0, %s27
    %s37 = sphi 0, %s37
    %s39 = sphi 0, %s37
    %s40 = sphi 0, %s39
    %s54 = sphi 0, %s40
    %s62 = sphi 0, %s64
    %s65 = sphi 0, %s62
    %s66 = sphi 0, %s65
    %s82 = sphi 0, %s66
    %s86 = sphi 0, %s86
    %s88 = sphi 0, %s86
    %s89 = sphi 0, %s88
    %s103 = sphi 0, %s89
    %s109 = sphi 0, %s111
    %s112 = sphi 0, %s109
    %s113 = sphi 0, %s112
    %s129 = sphi 0, %s113
    %s133 = sphi 0, %s133
    %s135 = sphi 0, %s133
    %s136 = sphi 0, %s135
    %s150 = sphi 0, %s136
    %s154 = sphi 0, %s154
    %s156 = sphi 0, %s154
    %s157 = sphi 0, %s156
    %s171 = sphi 0, %s157
    %s175 = sphi 0, %s175
    %s177 = sphi 0, %s175
    %s178 = sphi 0, %s177
    %s192 = sphi 0, %s178
    %s196 = sphi 0, %s196
    %s198 = sphi 0, %s196
    %s199 = sphi 0, %s198
    %s213 = sphi 0, %s199
    %s217 = sphi 0, %s217
    %s219 = sphi 0, %s217
    %s220 = sphi 0, %s219
    %s234 = sphi 0, %s220
    %s238 = sphi 0, %s238
    %s240 = sphi 0, %s238
    %s241 = sphi 0, %s240
    %s255 = sphi 0, %s241
    %s261 = sphi 0, %s263
    %s264 = sphi 0, %s261
    %s265 = sphi 0, %s264
    %s281 = sphi 0, %s265
  $region4: #{dgcn_forward.6} parent=0 // loop_header_branch
    %20 = sbr.rel (%p18) target = $region8
  $region5: #{dgcn_forward.6} parent=0 // loop_body
    %s22 = ssub.s32 %s17, 1
    %s23 = ssub.s32 %s17, 2
    %s30 = sadd.s32 1, %s25
    %p31 = scmp.ge.s32.totalorder %s30, 1
    %s32 = scalar_select %p31, 0, %s30
    %s33 = sadd.s32 1, %s24
    %s34 = scalar_select %p31, %s33, %s24
    %p35 = scmp.ge.s32.totalorder %s34, 2
    %s36 = scalar_select %p35, 0, %s34
    %s38 = sadd.s32 %s37, 1
    %p41 = scmp.eq.s32.totalorder %s17, 1
    %p42 = scmp.ne.s32.totalorder %s37, %s39
    %p43 = scmp.eq.s32.totalorder %s17, 0
    %p44 = por %p42, %p43
    %p45 = scmp.ne.s32.totalorder %s37, %s39
    %p46 = scmp.eq.s32.totalorder %s22, 1
    %p47 = por %p45, %p46
    %p48 = scmp.ne.s32.totalorder %s39, %s40
    %p49 = scmp.eq.s32.totalorder %s22, 0
    %p50 = por %p48, %p49
    %p51 = scmp.ne.s32.totalorder %s39, %s40
    %p52 = scmp.eq.s32.totalorder %s23, 1
    %p53 = por %p51, %p52
    %p55 = scmp.ne.s32.totalorder %s40, %s54
    %p56 = scmp.eq.s32.totalorder %s23, 0
    %p57 = por %p55, %p56
    %s58 = ssub.s32 %s24, %s36
    %s59 = ssub.s32 %s25, %s32
    %s60 = sor.u32 %s58, %s59
    %p61 = scmp.eq.s32.totalorder %s60, 0
    %s63 = sadd.s32 %s62, 1
    %s64 = scalar_select %p61, %s62, %s63
    %p67 = pneg %p61
    %p68 = scmp.eq.s32.totalorder %s17, 1
    %p69 = por %p67, %p68
    %p70 = scmp.ne.s32.totalorder %s62, %s65
    %p71 = scmp.eq.s32.totalorder %s17, 0
    %p72 = por %p70, %p71
    %p73 = scmp.ne.s32.totalorder %s62, %s65
    %p74 = scmp.eq.s32.totalorder %s22, 1
    %p75 = por %p73, %p74
    %p76 = scmp.ne.s32.totalorder %s65, %s66
    %p77 = scmp.eq.s32.totalorder %s22, 0
    %p78 = por %p76, %p77
    %p79 = scmp.ne.s32.totalorder %s65, %s66
    %p80 = scmp.eq.s32.totalorder %s23, 1
    %p81 = por %p79, %p80
    %p83 = scmp.ne.s32.totalorder %s66, %s82
    %p84 = scmp.eq.s32.totalorder %s23, 0
    %p85 = por %p83, %p84
    %s87 = sadd.s32 %s86, 1
    %p90 = scmp.eq.s32.totalorder %s17, 1
    %p91 = scmp.ne.s32.totalorder %s86, %s88
    %p92 = scmp.eq.s32.totalorder %s17, 0
    %p93 = por %p91, %p92
    %p94 = scmp.ne.s32.totalorder %s86, %s88
    %p95 = scmp.eq.s32.totalorder %s22, 1
    %p96 = por %p94, %p95
    %p97 = scmp.ne.s32.totalorder %s88, %s89
    %p98 = scmp.eq.s32.totalorder %s22, 0
    %p99 = por %p97, %p98
    %p100 = scmp.ne.s32.totalorder %s88, %s89
    %p101 = scmp.eq.s32.totalorder %s23, 1
    %p102 = por %p100, %p101
    %p104 = scmp.ne.s32.totalorder %s89, %s103
    %p105 = scmp.eq.s32.totalorder %s23, 0
    %p106 = por %p104, %p105
    %s107 = ssub.s32 %s24, %s36
    %p108 = scmp.eq.s32.totalorder %s107, 0
    %s110 = sadd.s32 %s109, 1
    %s111 = scalar_select %p108, %s109, %s110
    %p114 = pneg %p108
    %p115 = scmp.eq.s32.totalorder %s17, 1
    %p116 = por %p114, %p115
    %p117 = scmp.ne.s32.totalorder %s109, %s112
    %p118 = scmp.eq.s32.totalorder %s17, 0
    %p119 = por %p117, %p118
    %p120 = scmp.ne.s32.totalorder %s109, %s112
    %p121 = scmp.eq.s32.totalorder %s22, 1
    %p122 = por %p120, %p121
    %p123 = scmp.ne.s32.totalorder %s112, %s113
    %p124 = scmp.eq.s32.totalorder %s22, 0
    %p125 = por %p123, %p124
    %p126 = scmp.ne.s32.totalorder %s112, %s113
    %p127 = scmp.eq.s32.totalorder %s23, 1
    %p128 = por %p126, %p127
    %p130 = scmp.ne.s32.totalorder %s113, %s129
    %p131 = scmp.eq.s32.totalorder %s23, 0
    %p132 = por %p130, %p131
    %s134 = sadd.s32 %s133, 1
    %p137 = scmp.eq.s32.totalorder %s17, 1
    %p138 = scmp.ne.s32.totalorder %s133, %s135
    %p139 = scmp.eq.s32.totalorder %s17, 0
    %p140 = por %p138, %p139
    %p141 = scmp.ne.s32.totalorder %s133, %s135
    %p142 = scmp.eq.s32.totalorder %s22, 1
    %p143 = por %p141, %p142
    %p144 = scmp.ne.s32.totalorder %s135, %s136
    %p145 = scmp.eq.s32.totalorder %s22, 0
    %p146 = por %p144, %p145
    %p147 = scmp.ne.s32.totalorder %s135, %s136
    %p148 = scmp.eq.s32.totalorder %s23, 1
    %p149 = por %p147, %p148
    %p151 = scmp.ne.s32.totalorder %s136, %s150
    %p152 = scmp.eq.s32.totalorder %s23, 0
    %p153 = por %p151, %p152
    %s155 = sadd.s32 %s154, 1
    %p158 = scmp.eq.s32.totalorder %s17, 1
    %p159 = scmp.ne.s32.totalorder %s154, %s156
    %p160 = scmp.eq.s32.totalorder %s17, 0
    %p161 = por %p159, %p160
    %p162 = scmp.ne.s32.totalorder %s154, %s156
    %p163 = scmp.eq.s32.totalorder %s22, 1
    %p164 = por %p162, %p163
    %p165 = scmp.ne.s32.totalorder %s156, %s157
    %p166 = scmp.eq.s32.totalorder %s22, 0
    %p167 = por %p165, %p166
    %p168 = scmp.ne.s32.totalorder %s156, %s157
    %p169 = scmp.eq.s32.totalorder %s23, 1
    %p170 = por %p168, %p169
    %p172 = scmp.ne.s32.totalorder %s157, %s171
    %p173 = scmp.eq.s32.totalorder %s23, 0
    %p174 = por %p172, %p173
    %s176 = sadd.s32 %s175, 1
    %p179 = scmp.eq.s32.totalorder %s17, 1
    %p180 = scmp.ne.s32.totalorder %s175, %s177
    %p181 = scmp.eq.s32.totalorder %s17, 0
    %p182 = por %p180, %p181
    %p183 = scmp.ne.s32.totalorder %s175, %s177
    %p184 = scmp.eq.s32.totalorder %s22, 1
    %p185 = por %p183, %p184
    %p186 = scmp.ne.s32.totalorder %s177, %s178
    %p187 = scmp.eq.s32.totalorder %s22, 0
    %p188 = por %p186, %p187
    %p189 = scmp.ne.s32.totalorder %s177, %s178
    %p190 = scmp.eq.s32.totalorder %s23, 1
    %p191 = por %p189, %p190
    %p193 = scmp.ne.s32.totalorder %s178, %s192
    %p194 = scmp.eq.s32.totalorder %s23, 0
    %p195 = por %p193, %p194
    %s197 = sadd.s32 %s196, 1
    %p200 = scmp.eq.s32.totalorder %s17, 1
    %p201 = scmp.ne.s32.totalorder %s196, %s198
    %p202 = scmp.eq.s32.totalorder %s17, 0
    %p203 = por %p201, %p202
    %p204 = scmp.ne.s32.totalorder %s196, %s198
    %p205 = scmp.eq.s32.totalorder %s22, 1
    %p206 = por %p204, %p205
    %p207 = scmp.ne.s32.totalorder %s198, %s199
    %p208 = scmp.eq.s32.totalorder %s22, 0
    %p209 = por %p207, %p208
    %p210 = scmp.ne.s32.totalorder %s198, %s199
    %p211 = scmp.eq.s32.totalorder %s23, 1
    %p212 = por %p210, %p211
    %p214 = scmp.ne.s32.totalorder %s199, %s213
    %p215 = scmp.eq.s32.totalorder %s23, 0
    %p216 = por %p214, %p215
    %s218 = sadd.s32 %s217, 1
    %p221 = scmp.eq.s32.totalorder %s17, 1
    %p222 = scmp.ne.s32.totalorder %s217, %s219
    %p223 = scmp.eq.s32.totalorder %s17, 0
    %p224 = por %p222, %p223
    %p225 = scmp.ne.s32.totalorder %s217, %s219
    %p226 = scmp.eq.s32.totalorder %s22, 1
    %p227 = por %p225, %p226
    %p228 = scmp.ne.s32.totalorder %s219, %s220
    %p229 = scmp.eq.s32.totalorder %s22, 0
    %p230 = por %p228, %p229
    %p231 = scmp.ne.s32.totalorder %s219, %s220
    %p232 = scmp.eq.s32.totalorder %s23, 1
    %p233 = por %p231, %p232
    %p235 = scmp.ne.s32.totalorder %s220, %s234
    %p236 = scmp.eq.s32.totalorder %s23, 0
    %p237 = por %p235, %p236
    %s239 = sadd.s32 %s238, 1
    %p242 = scmp.eq.s32.totalorder %s17, 1
    %p243 = scmp.ne.s32.totalorder %s238, %s240
    %p244 = scmp.eq.s32.totalorder %s17, 0
    %p245 = por %p243, %p244
    %p246 = scmp.ne.s32.totalorder %s238, %s240
    %p247 = scmp.eq.s32.totalorder %s22, 1
    %p248 = por %p246, %p247
    %p249 = scmp.ne.s32.totalorder %s240, %s241
    %p250 = scmp.eq.s32.totalorder %s22, 0
    %p251 = por %p249, %p250
    %p252 = scmp.ne.s32.totalorder %s240, %s241
    %p253 = scmp.eq.s32.totalorder %s23, 1
    %p254 = por %p252, %p253
    %p256 = scmp.ne.s32.totalorder %s241, %s255
    %p257 = scmp.eq.s32.totalorder %s23, 0
    %p258 = por %p256, %p257
    %s259 = ssub.s32 %s24, %s36
    %p260 = scmp.eq.s32.totalorder %s259, 0
    %s262 = sadd.s32 %s261, 1
    %s263 = scalar_select %p260, %s261, %s262
    %p266 = pneg %p260
    %p267 = scmp.eq.s32.totalorder %s17, 1
    %p268 = por %p266, %p267
    %p269 = scmp.ne.s32.totalorder %s261, %s264
    %p270 = scmp.eq.s32.totalorder %s17, 0
    %p271 = por %p269, %p270
    %p272 = scmp.ne.s32.totalorder %s261, %s264
    %p273 = scmp.eq.s32.totalorder %s22, 1
    %p274 = por %p272, %p273
    %p275 = scmp.ne.s32.totalorder %s264, %s265
    %p276 = scmp.eq.s32.totalorder %s22, 0
    %p277 = por %p275, %p276
    %p278 = scmp.ne.s32.totalorder %s264, %s265
    %p279 = scmp.eq.s32.totalorder %s23, 1
    %p280 = por %p278, %p279
    %p282 = scmp.ne.s32.totalorder %s265, %s281
    %p283 = scmp.eq.s32.totalorder %s23, 0
    %p284 = por %p282, %p283
    %p285 = scmp.le.s32.totalorder 1, %s17
    %p286 = scmp.lt.s32.totalorder %s17, 3
    %p287 = pnand %p285, %p286
    %p288 = pneg %p287
    // Predicated region
    $region9: #{dgcn_forward.6} parent=5 // pred_check
      _
    $region10: #{dgcn_forward.6} parent=5 // pred_check_branch
      %290 = sbr.rel (%p287) target = $region12
    $region11: #{dgcn_forward.6} parent=5 // pred_region
      %s291 = ssub.s32 %s17, 1
      // Predicated region
      $region13: #{dgcn_forward.6} parent=11 // pred_check
        %p292 = pneg %p50
      $region14: #{dgcn_forward.6} parent=11 // pred_check_branch
        %294 = sbr.rel (%p292) target = $region16
      $region15: #{dgcn_forward.6} parent=11 // pred_region
        _
      $region16: #{dgcn_forward.6} parent=11 // pred_fallthru
        _
      // Predicated region
      $region17: #{dgcn_forward.6} parent=11 // pred_check
        %p295 = pneg %p99
      $region18: #{dgcn_forward.6} parent=11 // pred_check_branch
        %297 = sbr.rel (%p295) target = $region20
      $region19: #{dgcn_forward.6} parent=11 // pred_region
        _
      $region20: #{dgcn_forward.6} parent=11 // pred_fallthru
        _
      // Predicated region
      $region21: #{dgcn_forward.6} parent=11 // pred_check
        %p298 = pneg %p146
      $region22: #{dgcn_forward.6} parent=11 // pred_check_branch
        %300 = sbr.rel (%p298) target = $region24
      $region23: #{dgcn_forward.6} parent=11 // pred_region
        _
      $region24: #{dgcn_forward.6} parent=11 // pred_fallthru
        _
      // Predicated region
      $region25: #{dgcn_forward.6} parent=11 // pred_check
        %p301 = pneg %p167
      $region26: #{dgcn_forward.6} parent=11 // pred_check_branch
        %303 = sbr.rel (%p301) target = $region28
      $region27: #{dgcn_forward.6} parent=11 // pred_region
        _
      $region28: #{dgcn_forward.6} parent=11 // pred_fallthru
        _
      // Predicated region
      $region29: #{dgcn_forward.6} parent=11 // pred_check
        %p304 = pneg %p188
      $region30: #{dgcn_forward.6} parent=11 // pred_check_branch
        %306 = sbr.rel (%p304) target = $region32
      $region31: #{dgcn_forward.6} parent=11 // pred_region
        _
      $region32: #{dgcn_forward.6} parent=11 // pred_fallthru
        _
      // Predicated region
      $region33: #{dgcn_forward.6} parent=11 // pred_check
        %p307 = pneg %p209
      $region34: #{dgcn_forward.6} parent=11 // pred_check_branch
        %309 = sbr.rel (%p307) target = $region36
      $region35: #{dgcn_forward.6} parent=11 // pred_region
        _
      $region36: #{dgcn_forward.6} parent=11 // pred_fallthru
        _
      // Predicated region
      $region37: #{dgcn_forward.6} parent=11 // pred_check
        %p310 = pneg %p230
      $region38: #{dgcn_forward.6} parent=11 // pred_check_branch
        %312 = sbr.rel (%p310) target = $region40
      $region39: #{dgcn_forward.6} parent=11 // pred_region
        _
      $region40: #{dgcn_forward.6} parent=11 // pred_fallthru
        _
      // Predicated region
      $region41: #{dgcn_forward.6} parent=11 // pred_check
        %p313 = pneg %p251
      $region42: #{dgcn_forward.6} parent=11 // pred_check_branch
        %315 = sbr.rel (%p313) target = $region44
      $region43: #{dgcn_forward.6} parent=11 // pred_region
        _
      $region44: #{dgcn_forward.6} parent=11 // pred_fallthru
        _
    $region12: #{dgcn_forward.6} parent=5 // pred_fallthru
      _
    %p316 = scmp.lt.s32.totalorder %s17, 2
    // Predicated region
    $region45: #{dgcn_forward.6} parent=5 // pred_check
      %p317 = pneg %p316
    $region46: #{dgcn_forward.6} parent=5 // pred_check_branch
      %319 = sbr.rel (%p317) target = $region48
    $region47: #{dgcn_forward.6} parent=5 // pred_region
      // Predicated region
      $region49: #{dgcn_forward.6} parent=47 // pred_check
        %p320 = pneg %p72
      $region50: #{dgcn_forward.6} parent=47 // pred_check_branch
        %322 = sbr.rel (%p320) target = $region52
      $region51: #{dgcn_forward.6} parent=47 // pred_region
        %s323 = smul.u32 2, %s24
        %p324 = scmp.lt.s32.totalorder %s323, 3
        %s325 = scalar_select %p324, %s323, 3
        %p326 = scmp.lt.s32.totalorder %s25, 0
        %s327 = scalar_select %p326, %s25, 0
        %s328 = sadd.s32 %s327, %s325
        %s329 = smul.addr %s328, 8
        %s330 = scalar_lea.vmem %s1, %s329
        %s331 = smul.u32 2, %s24
      $region52: #{dgcn_forward.6} parent=47 // pred_fallthru
        _
      // Predicated region
      $region53: #{dgcn_forward.6} parent=47 // pred_check
        %p332 = pneg %p119
      $region54: #{dgcn_forward.6} parent=47 // pred_check_branch
        %334 = sbr.rel (%p332) target = $region56
      $region55: #{dgcn_forward.6} parent=47 // pred_region
        %s335 = smul.u32 8, %s24
        %p336 = scmp.lt.s32.totalorder %s335, 15
        %s337 = scalar_select %p336, %s335, 15
        %s338 = smul.addr %s337, 4
        %s339 = scalar_lea.vmem %s3, %s338
        %s340 = smul.u32 8, %s24
      $region56: #{dgcn_forward.6} parent=47 // pred_fallthru
        _
    $region48: #{dgcn_forward.6} parent=5 // pred_fallthru
      _
    %p341 = scmp.le.s32.totalorder 1, %s17
    %p342 = scmp.lt.s32.totalorder %s17, 3
    %p343 = pnand %p341, %p342
    %p344 = pneg %p343
    // Predicated region
    $region57: #{dgcn_forward.6} parent=5 // pred_check
      _
    $region58: #{dgcn_forward.6} parent=5 // pred_check_branch
      %346 = sbr.rel (%p343) target = $region60
    $region59: #{dgcn_forward.6} parent=5 // pred_region
      %s347 = ssub.s32 %s17, 1
      %p348 = pneg %p50
      %p349 = pneg %p47
      %s350 = smul.u32 2, %s26
      %p351 = scmp.lt.s32.totalorder %s350, 3
      %s352 = scalar_select %p351, %s350, 3
      %p353 = scmp.lt.s32.totalorder %s27, 0
      %s354 = scalar_select %p353, %s27, 0
      %s355 = sadd.s32 %s354, %s352
      %s356 = smul.addr %s355, 8
      %s357 = scalar_lea.vmem %s1, %s356
      %p358 = pneg %p78
      %p359 = pneg %p75
      %p360 = pneg %p99
      %p361 = pneg %p96
      %s362 = smul.u32 8, %s26
      %p363 = scmp.lt.s32.totalorder %s362, 15
      %s364 = scalar_select %p363, %s362, 15
      %s365 = smul.addr %s364, 4
      %s366 = scalar_lea.vmem %s3, %s365
      %p367 = pneg %p125
      %p368 = pneg %p122
      %p369 = pneg %p146
      %p370 = pneg %p143
      %p371 = pneg %p167
      %p372 = pneg %p164
      %p373 = pneg %p188
      %p374 = pneg %p185
      %p375 = pneg %p209
      %p376 = pneg %p206
      %p377 = pneg %p230
      %p378 = pneg %p227
      %p379 = pneg %p251
      %p380 = pneg %p248
      %p381 = pneg %p277
      %p382 = pneg %p274
      %s383 = smul.u32 8, %s26
      %p384 = scmp.lt.s32.totalorder %s383, 15
      %s385 = scalar_select %p384, %s383, 15
      %s386 = smul.addr %s385, 8
      %s387 = scalar_lea.vmem %s10, %s386
      %s388 = smul.u32 2, %s26
      %p389 = scmp.lt.s32.totalorder %s388, 3
      %s390 = scalar_select %p389, %s388, 3
      %p391 = scmp.lt.s32.totalorder %s27, 0
      %s392 = scalar_select %p391, %s27, 0
      %s393 = sadd.s32 %s392, %s390
      %s394 = smul.addr %s393, 8
      %s395 = scalar_lea.vmem %s1, %s394
      %s396 = smul.u32 2, %s26
      %s397 = smul.u32 8, %s26
      %p398 = scmp.lt.s32.totalorder %s397, 15
      %s399 = scalar_select %p398, %s397, 15
      %s400 = smul.addr %s399, 4
      %s401 = scalar_lea.vmem %s3, %s400
      %s402 = smul.u32 8, %s26
      %s403 = smul.u32 8, %s26
      %p404 = scmp.lt.s32.totalorder %s403, 15
      %s405 = scalar_select %p404, %s403, 15
      %s406 = smul.addr %s405, 8
      %s407 = scalar_lea.vmem %s10, %s406
      %s408 = smul.u32 8, %s26
      %v410 = vld [vmem:[%s395] sm:$0xff]
      %v411 = vld [vmem:[%s395 + $0x8] sm:$0xff]
      %v412 = vunpack.c.l.s8.bf16 %v410
      %v413 = vunpack.c.h.s8.bf16 %v410
      %v414 = vunpack.c.l.s8.bf16 %v411
      %v415 = vunpack.c.h.s8.bf16 %v411
      %s416 = smul.u32 %s27, 128
      %s417 = sshra.s32 %s416, 3
      %s418 = sand.u32 %s416, 7
      %s419 = smul.addr %s417, 4
      %s420 = scalar_lea.vmem %s2, %s419
      %v421 = vld [vmem:[%s420] sm:$0xf]
      %v422 = vld [vmem:[%s420 + $0x4] sm:$0xf]
      %v423 = vld [vmem:[%s420 + $0x8] sm:$0xf]
      %v424 = vld [vmem:[%s420 + $0xc] sm:$0xf]
      %v425 = vld [vmem:[%s420 + $0x10] sm:$0xf]
      %v426 = vld [vmem:[%s420 + $0x14] sm:$0xf]
      %v427 = vld [vmem:[%s420 + $0x18] sm:$0xf]
      %v428 = vld [vmem:[%s420 + $0x1c] sm:$0xf]
      %v429 = vld [vmem:[%s420 + $0x20] sm:$0xf]
      %v430 = vld [vmem:[%s420 + $0x24] sm:$0xf]
      %v431 = vld [vmem:[%s420 + $0x28] sm:$0xf]
      %v432 = vld [vmem:[%s420 + $0x2c] sm:$0xf]
      %v433 = vld [vmem:[%s420 + $0x30] sm:$0xf]
      %v434 = vld [vmem:[%s420 + $0x34] sm:$0xf]
      %v435 = vld [vmem:[%s420 + $0x38] sm:$0xf]
      %v436 = vld [vmem:[%s420 + $0x3c] sm:$0xf]
      %v453 = vunpack.c.l.b16 %v421
      %v454 = vunpack.c.l.b16 %v422
      %v455 = vunpack.c.l.b16 %v423
      %v456 = vunpack.c.l.b16 %v424
      %v457 = vunpack.c.l.b16 %v425
      %v458 = vunpack.c.l.b16 %v426
      %v459 = vunpack.c.l.b16 %v427
      %v460 = vunpack.c.l.b16 %v428
      %v461 = vunpack.c.l.b16 %v429
      %v462 = vunpack.c.l.b16 %v430
      %v463 = vunpack.c.l.b16 %v431
      %v464 = vunpack.c.l.b16 %v432
      %v465 = vunpack.c.l.b16 %v433
      %v466 = vunpack.c.l.b16 %v434
      %v467 = vunpack.c.l.b16 %v435
      %v468 = vunpack.c.l.b16 %v436
      %v469 = vpack.c.b16 %v454, %v453
      %v470 = vpack.c.b16 %v456, %v455
      %v471 = vpack.c.b16 %v458, %v457
      %v472 = vpack.c.b16 %v460, %v459
      %v473 = vpack.c.b16 %v462, %v461
      %v474 = vpack.c.b16 %v464, %v463
      %v475 = vpack.c.b16 %v466, %v465
      %v476 = vpack.c.b16 %v468, %v467
      %485 = vmatprep.subr.bf16.mxu0 0
      %486 = vmatpush1.bf16.msra.mxu0 %v469
      %487 = vmatprep.subr.bf16.mxu0 0
      %488 = vmatpush1.bf16.msra.mxu0 %v470
      %489 = vmatprep.subr.bf16.mxu0 0
      %490 = vmatpush1.bf16.msra.mxu0 %v471
      %491 = vmatprep.subr.bf16.mxu0 0
      %492 = vmatpush1.bf16.msra.mxu0 %v472
      %493 = vmatprep.subr.bf16.mxu0 0
      %494 = vmatpush1.bf16.msra.mxu0 %v473
      %495 = vmatprep.subr.bf16.mxu0 0
      %496 = vmatpush1.bf16.msra.mxu0 %v474
      %497 = vmatprep.subr.bf16.mxu0 0
      %498 = vmatpush1.bf16.msra.mxu0 %v475
      %499 = vmatprep.subr.bf16.mxu0 0
      %500 = vmatpush1.bf16.msra.mxu0 %v476
      %501 = vmatprep.subr.bf16.mxu0 0
      %502 = vmatpush1.bf16.msra.mxu0 0
      %503 = vmatprep.subr.bf16.mxu0 0
      %504 = vmatpush1.bf16.msra.mxu0 0
      %505 = vmatprep.subr.bf16.mxu0 0
      %506 = vmatpush1.bf16.msra.mxu0 0
      %507 = vmatprep.subr.bf16.mxu0 0
      %508 = vmatpush1.bf16.msra.mxu0 0
      %509 = vmatprep.subr.bf16.mxu0 0
      %510 = vmatpush1.bf16.msra.mxu0 0
      %511 = vmatprep.subr.bf16.mxu0 0
      %512 = vmatpush1.bf16.msra.mxu0 0
      %513 = vmatprep.subr.bf16.mxu0 0
      %514 = vmatpush1.bf16.msra.mxu0 0
      %515 = vmatprep.subr.bf16.mxu0 0
      %516 = vmatpush1.bf16.msra.mxu0 0
      %517 = vmatprep.mubr.bf16.mxu0 0
      %518 = vmatmul.mubr.bf16.gmra.mrb[0].mxu0 %v412
      %v519 = vpop.f32.mrb[0].mxu0
      %v520 = vadd.f32 0.0, %v519
      %v521 = vpop.f32.mrb[0].mxu0
      %v522 = vpop.f32.mrb[0].mxu0
      %v523 = vadd.f32 0.0, %v522
      %v524 = vpop.f32.mrb[0].mxu0
      %525 = vmatprep.mubr.bf16.mxu0 0
      %526 = vmatmul.mubr.bf16.gmra.mrb[0].mxu0 %v413
      %v527 = vpop.f32.mrb[0].mxu0
      %v528 = vadd.f32 0.0, %v527
      %v529 = vpop.f32.mrb[0].mxu0
      %v530 = vpop.f32.mrb[0].mxu0
      %v531 = vadd.f32 0.0, %v530
      %v532 = vpop.f32.mrb[0].mxu0
      %533 = vmatprep.mubr.bf16.mxu0 0
      %534 = vmatmul.mubr.bf16.gmra.mrb[0].mxu0 %v414
      %v535 = vpop.f32.mrb[0].mxu0
      %v536 = vadd.f32 0.0, %v535
      %v537 = vpop.f32.mrb[0].mxu0
      %v538 = vpop.f32.mrb[0].mxu0
      %v539 = vadd.f32 0.0, %v538
      %v540 = vpop.f32.mrb[0].mxu0
      %541 = vmatprep.mubr.bf16.mxu0 0
      %542 = vmatmul.mubr.bf16.gmra.mrb[0].mxu0 %v415
      %v543 = vpop.f32.mrb[0].mxu0
      %v544 = vadd.f32 0.0, %v543
      %v545 = vpop.f32.mrb[0].mxu0
      %v546 = vpop.f32.mrb[0].mxu0
      %v547 = vadd.f32 0.0, %v546
      %v548 = vpop.f32.mrb[0].mxu0
      %549 = vdwg.mxu0
      %p550 = scmp.eq.s32.totalorder %s27, 0
      // Predicated region
      $region61: #{dgcn_forward.6} parent=59 // pred_check
        %p551 = pneg %p550
      $region62: #{dgcn_forward.6} parent=59 // pred_check_branch
        %553 = sbr.rel (%p551) target = $region64
      $region63: #{dgcn_forward.6} parent=59 // pred_region
        %554 = vst [vmem:[#allocation2] sm:$0xff] %v520
        %555 = vst [vmem:[#allocation2 + $0x8] sm:$0xff] %v523
        %556 = vst [vmem:[#allocation2 + $0x10] sm:$0xff] %v528
        %557 = vst [vmem:[#allocation2 + $0x18] sm:$0xff] %v531
        %558 = vst [vmem:[#allocation2 + $0x20] sm:$0xff] %v536
        %559 = vst [vmem:[#allocation2 + $0x28] sm:$0xff] %v539
        %560 = vst [vmem:[#allocation2 + $0x30] sm:$0xff] %v544
        %561 = vst [vmem:[#allocation2 + $0x38] sm:$0xff] %v547
      $region64: #{dgcn_forward.6} parent=59 // pred_fallthru
        _
      %p562 = scmp.gt.s32.totalorder %s27, 0
      // Predicated region
      $region65: #{dgcn_forward.6} parent=59 // pred_check
        %p563 = pneg %p562
      $region66: #{dgcn_forward.6} parent=59 // pred_check_branch
        %565 = sbr.rel (%p563) target = $region68
      $region67: #{dgcn_forward.6} parent=59 // pred_region
        %v566 = vld [vmem:[#allocation2] sm:$0xff]
        %v567 = vld [vmem:[#allocation2 + $0x8] sm:$0xff]
        %v568 = vld [vmem:[#allocation2 + $0x10] sm:$0xff]
        %v569 = vld [vmem:[#allocation2 + $0x18] sm:$0xff]
        %v570 = vld [vmem:[#allocation2 + $0x20] sm:$0xff]
        %v571 = vld [vmem:[#allocation2 + $0x28] sm:$0xff]
        %v572 = vld [vmem:[#allocation2 + $0x30] sm:$0xff]
        %v573 = vld [vmem:[#allocation2 + $0x38] sm:$0xff]
        %v574 = vadd.f32 %v566, %v520
        %v575 = vadd.f32 %v567, %v523
        %v576 = vadd.f32 %v568, %v528
        %v577 = vadd.f32 %v569, %v531
        %v578 = vadd.f32 %v570, %v536
        %v579 = vadd.f32 %v571, %v539
        %v580 = vadd.f32 %v572, %v544
        %v581 = vadd.f32 %v573, %v547
        %582 = vst [vmem:[#allocation2] sm:$0xff] %v574
        %583 = vst [vmem:[#allocation2 + $0x8] sm:$0xff] %v575
        %584 = vst [vmem:[#allocation2 + $0x10] sm:$0xff] %v576
        %585 = vst [vmem:[#allocation2 + $0x18] sm:$0xff] %v577
        %586 = vst [vmem:[#allocation2 + $0x20] sm:$0xff] %v578
        %587 = vst [vmem:[#allocation2 + $0x28] sm:$0xff] %v579
        %588 = vst [vmem:[#allocation2 + $0x30] sm:$0xff] %v580
        %589 = vst [vmem:[#allocation2 + $0x38] sm:$0xff] %v581
      $region68: #{dgcn_forward.6} parent=59 // pred_fallthru
        _
      // Predicated region
      $region69: #{dgcn_forward.6} parent=59 // pred_check
        %p590 = pneg %p550
      $region70: #{dgcn_forward.6} parent=59 // pred_check_branch
        %592 = sbr.rel (%p590) target = $region72
      $region71: #{dgcn_forward.6} parent=59 // pred_region
        %v593 = vld [vmem:[#allocation2] sm:$0xff]
        %v594 = vld [vmem:[#allocation2 + $0x8] sm:$0xff]
        %v595 = vld [vmem:[#allocation2 + $0x10] sm:$0xff]
        %v596 = vld [vmem:[#allocation2 + $0x18] sm:$0xff]
        %v597 = vld [vmem:[#allocation2 + $0x20] sm:$0xff]
        %v598 = vld [vmem:[#allocation2 + $0x28] sm:$0xff]
        %v599 = vld [vmem:[#allocation2 + $0x30] sm:$0xff]
        %v600 = vld [vmem:[#allocation2 + $0x38] sm:$0xff]
        %v601 = vpack.c.bf16 %v594, %v593
        %v602 = vpack.c.bf16 %v596, %v595
        %v603 = vpack.c.bf16 %v598, %v597
        %v604 = vpack.c.bf16 %v600, %v599
        %v605 = vld [vmem:[%s4] sm:$0xf]
        %v606 = vld [vmem:[%s4 + $0x4] sm:$0xf]
        %v607 = vld [vmem:[%s4 + $0x8] sm:$0xf]
        %v608 = vld [vmem:[%s4 + $0xc] sm:$0xf]
        %v609 = vld [vmem:[%s4 + $0x10] sm:$0xf]
        %v610 = vld [vmem:[%s4 + $0x14] sm:$0xf]
        %v611 = vld [vmem:[%s4 + $0x18] sm:$0xf]
        %v612 = vld [vmem:[%s4 + $0x1c] sm:$0xf]
        %v613 = vld [vmem:[%s4 + $0x20] sm:$0xf]
        %v614 = vld [vmem:[%s4 + $0x24] sm:$0xf]
        %v615 = vld [vmem:[%s4 + $0x28] sm:$0xf]
        %v616 = vld [vmem:[%s4 + $0x2c] sm:$0xf]
        %v617 = vld [vmem:[%s4 + $0x30] sm:$0xf]
        %v618 = vld [vmem:[%s4 + $0x34] sm:$0xf]
        %v619 = vld [vmem:[%s4 + $0x38] sm:$0xf]
        %v620 = vld [vmem:[%s4 + $0x3c] sm:$0xf]
        %v637 = vunpack.c.l.b16 %v605
        %v638 = vunpack.c.l.b16 %v606
        %v639 = vunpack.c.l.b16 %v607
        %v640 = vunpack.c.l.b16 %v608
        %v641 = vunpack.c.l.b16 %v609
        %v642 = vunpack.c.l.b16 %v610
        %v643 = vunpack.c.l.b16 %v611
        %v644 = vunpack.c.l.b16 %v612
        %v645 = vunpack.c.l.b16 %v613
        %v646 = vunpack.c.l.b16 %v614
        %v647 = vunpack.c.l.b16 %v615
        %v648 = vunpack.c.l.b16 %v616
        %v649 = vunpack.c.l.b16 %v617
        %v650 = vunpack.c.l.b16 %v618
        %v651 = vunpack.c.l.b16 %v619
        %v652 = vunpack.c.l.b16 %v620
        %v653 = vpack.c.b16 %v638, %v637
        %v654 = vpack.c.b16 %v640, %v639
        %v655 = vpack.c.b16 %v642, %v641
        %v656 = vpack.c.b16 %v644, %v643
        %v657 = vpack.c.b16 %v646, %v645
        %v658 = vpack.c.b16 %v648, %v647
        %v659 = vpack.c.b16 %v650, %v649
        %v660 = vpack.c.b16 %v652, %v651
        %669 = vmatprep.subr.bf16.mxu0 0
        %670 = vmatpush1.bf16.msra.mxu0 %v653
        %671 = vmatprep.subr.bf16.mxu0 0
        %672 = vmatpush1.bf16.msra.mxu0 %v654
        %673 = vmatprep.subr.bf16.mxu0 0
        %674 = vmatpush1.bf16.msra.mxu0 %v655
        %675 = vmatprep.subr.bf16.mxu0 0
        %676 = vmatpush1.bf16.msra.mxu0 %v656
        %677 = vmatprep.subr.bf16.mxu0 0
        %678 = vmatpush1.bf16.msra.mxu0 %v657
        %679 = vmatprep.subr.bf16.mxu0 0
        %680 = vmatpush1.bf16.msra.mxu0 %v658
        %681 = vmatprep.subr.bf16.mxu0 0
        %682 = vmatpush1.bf16.msra.mxu0 %v659
        %683 = vmatprep.subr.bf16.mxu0 0
        %684 = vmatpush1.bf16.msra.mxu0 %v660
        %685 = vmatprep.subr.bf16.mxu0 0
        %686 = vmatpush1.bf16.msra.mxu0 0
        %687 = vmatprep.subr.bf16.mxu0 0
        %688 = vmatpush1.bf16.msra.mxu0 0
        %689 = vmatprep.subr.bf16.mxu0 0
        %690 = vmatpush1.bf16.msra.mxu0 0
        %691 = vmatprep.subr.bf16.mxu0 0
        %692 = vmatpush1.bf16.msra.mxu0 0
        %693 = vmatprep.subr.bf16.mxu0 0
        %694 = vmatpush1.bf16.msra.mxu0 0
        %695 = vmatprep.subr.bf16.mxu0 0
        %696 = vmatpush1.bf16.msra.mxu0 0
        %697 = vmatprep.subr.bf16.mxu0 0
        %698 = vmatpush1.bf16.msra.mxu0 0
        %699 = vmatprep.subr.bf16.mxu0 0
        %700 = vmatpush1.bf16.msra.mxu0 0
        %701 = vmatprep.mubr.bf16.mxu0 0
        %702 = vmatmul.mubr.bf16.gmra.mrb[0].mxu0 %v601
        %v703 = vpop.f32.mrb[0].mxu0
        %v704 = vadd.f32 0.0, %v703
        %v705 = vpop.f32.mrb[0].mxu0
        %v706 = vpop.f32.mrb[0].mxu0
        %v707 = vadd.f32 0.0, %v706
        %v708 = vpop.f32.mrb[0].mxu0
        %709 = vmatprep.mubr.bf16.mxu0 0
        %710 = vmatmul.mubr.bf16.gmra.mrb[0].mxu0 %v602
        %v711 = vpop.f32.mrb[0].mxu0
        %v712 = vadd.f32 0.0, %v711
        %v713 = vpop.f32.mrb[0].mxu0
        %v714 = vpop.f32.mrb[0].mxu0
        %v715 = vadd.f32 0.0, %v714
        %v716 = vpop.f32.mrb[0].mxu0
        %717 = vmatprep.mubr.bf16.mxu0 0
        %718 = vmatmul.mubr.bf16.gmra.mrb[0].mxu0 %v603
        %v719 = vpop.f32.mrb[0].mxu0
        %v720 = vadd.f32 0.0, %v719
        %v721 = vpop.f32.mrb[0].mxu0
        %v722 = vpop.f32.mrb[0].mxu0
        %v723 = vadd.f32 0.0, %v722
        %v724 = vpop.f32.mrb[0].mxu0
        %725 = vmatprep.mubr.bf16.mxu0 0
        %726 = vmatmul.mubr.bf16.gmra.mrb[0].mxu0 %v604
        %v727 = vpop.f32.mrb[0].mxu0
        %v728 = vadd.f32 0.0, %v727
        %v729 = vpop.f32.mrb[0].mxu0
        %v730 = vpop.f32.mrb[0].mxu0
        %v731 = vadd.f32 0.0, %v730
        %v732 = vpop.f32.mrb[0].mxu0
        %733 = vdwg.mxu0
        %v734 = vmax.f32 %v704, 0.0
        %v735 = vmax.f32 %v707, 0.0
        %v736 = vmax.f32 %v712, 0.0
        %v737 = vmax.f32 %v715, 0.0
        %v738 = vmax.f32 %v720, 0.0
        %v739 = vmax.f32 %v723, 0.0
        %v740 = vmax.f32 %v728, 0.0
        %v741 = vmax.f32 %v731, 0.0
        %v742 = vpack.c.bf16 %v735, %v734
        %v743 = vpack.c.bf16 %v737, %v736
        %v744 = vpack.c.bf16 %v739, %v738
        %v745 = vpack.c.bf16 %v741, %v740
        %v746 = vld [vmem:[%s5] sm:$0xf]
        %v747 = vld [vmem:[%s5 + $0x4] sm:$0xf]
        %v748 = vld [vmem:[%s5 + $0x8] sm:$0xf]
        %v749 = vld [vmem:[%s5 + $0xc] sm:$0xf]
        %v750 = vld [vmem:[%s5 + $0x10] sm:$0xf]
        %v751 = vld [vmem:[%s5 + $0x14] sm:$0xf]
        %v752 = vld [vmem:[%s5 + $0x18] sm:$0xf]
        %v753 = vld [vmem:[%s5 + $0x1c] sm:$0xf]
        %v754 = vld [vmem:[%s5 + $0x20] sm:$0xf]
        %v755 = vld [vmem:[%s5 + $0x24] sm:$0xf]
        %v756 = vld [vmem:[%s5 + $0x28] sm:$0xf]
        %v757 = vld [vmem:[%s5 + $0x2c] sm:$0xf]
        %v758 = vld [vmem:[%s5 + $0x30] sm:$0xf]
        %v759 = vld [vmem:[%s5 + $0x34] sm:$0xf]
        %v760 = vld [vmem:[%s5 + $0x38] sm:$0xf]
        %v761 = vld [vmem:[%s5 + $0x3c] sm:$0xf]
        %v762 = vld [vmem:[%s401] sm:$0xf]
        %v763 = vld [vmem:[%s401 + $0x4] sm:$0xf]
        %v764 = vld [vmem:[%s401 + $0x8] sm:$0xf]
        %v765 = vld [vmem:[%s401 + $0xc] sm:$0xf]
        %v766 = vld [vmem:[%s401 + $0x10] sm:$0xf]
        %v767 = vld [vmem:[%s401 + $0x14] sm:$0xf]
        %v768 = vld [vmem:[%s401 + $0x18] sm:$0xf]
        %v769 = vld [vmem:[%s401 + $0x1c] sm:$0xf]
        %v770 = vld [vmem:[%s6] sm:$0xf]
        %v771 = vld [vmem:[%s6 + $0x4] sm:$0xf]
        %v772 = vld [vmem:[%s6 + $0x8] sm:$0xf]
        %v773 = vld [vmem:[%s6 + $0xc] sm:$0xf]
        %v774 = vld [vmem:[%s6 + $0x10] sm:$0xf]
        %v775 = vld [vmem:[%s6 + $0x14] sm:$0xf]
        %v776 = vld [vmem:[%s6 + $0x18] sm:$0xf]
        %v777 = vld [vmem:[%s6 + $0x1c] sm:$0xf]
        %v778 = vld [vmem:[%s6 + $0x20] sm:$0xf]
        %v779 = vld [vmem:[%s6 + $0x24] sm:$0xf]
        %v780 = vld [vmem:[%s6 + $0x28] sm:$0xf]
        %v781 = vld [vmem:[%s6 + $0x2c] sm:$0xf]
        %v782 = vld [vmem:[%s6 + $0x30] sm:$0xf]
        %v783 = vld [vmem:[%s6 + $0x34] sm:$0xf]
        %v784 = vld [vmem:[%s6 + $0x38] sm:$0xf]
        %v785 = vld [vmem:[%s6 + $0x3c] sm:$0xf]
        %v794 = vunpack.c.l.b16 %v762
        %v795 = vunpack.c.l.b16 %v763
        %v796 = vunpack.c.l.b16 %v764
        %v797 = vunpack.c.l.b16 %v765
        %v798 = vunpack.c.l.b16 %v766
        %v799 = vunpack.c.l.b16 %v767
        %v800 = vunpack.c.l.b16 %v768
        %v801 = vunpack.c.l.b16 %v769
        %v802 = vpack.c.b16 %v795, %v794
        %v803 = vpack.c.b16 %v797, %v796
        %v804 = vpack.c.b16 %v799, %v798
        %v805 = vpack.c.b16 %v801, %v800
        %v826 = vunpack.c.l.b16 %v770
        %v827 = vunpack.c.l.b16 %v771
        %v828 = vunpack.c.l.b16 %v772
        %v829 = vunpack.c.l.b16 %v773
        %v830 = vunpack.c.l.b16 %v774
        %v831 = vunpack.c.l.b16 %v775
        %v832 = vunpack.c.l.b16 %v776
        %v833 = vunpack.c.l.b16 %v777
        %v834 = vunpack.c.l.b16 %v778
        %v835 = vunpack.c.l.b16 %v779
        %v836 = vunpack.c.l.b16 %v780
        %v837 = vunpack.c.l.b16 %v781
        %v838 = vunpack.c.l.b16 %v782
        %v839 = vunpack.c.l.b16 %v783
        %v840 = vunpack.c.l.b16 %v784
        %v841 = vunpack.c.l.b16 %v785
        %v842 = vpack.c.b16 %v827, %v826
        %v843 = vpack.c.b16 %v829, %v828
        %v844 = vpack.c.b16 %v831, %v830
        %v845 = vpack.c.b16 %v833, %v832
        %v846 = vpack.c.b16 %v835, %v834
        %v847 = vpack.c.b16 %v837, %v836
        %v848 = vpack.c.b16 %v839, %v838
        %v849 = vpack.c.b16 %v841, %v840
        %858 = vmatprep.subr.bf16.mxu0 0
        %859 = vmatpush1.bf16.msra.mxu0 %v842
        %860 = vmatprep.subr.bf16.mxu0 0
        %861 = vmatpush1.bf16.msra.mxu0 %v843
        %862 = vmatprep.subr.bf16.mxu0 0
        %863 = vmatpush1.bf16.msra.mxu0 %v844
        %864 = vmatprep.subr.bf16.mxu0 0
        %865 = vmatpush1.bf16.msra.mxu0 %v845
        %866 = vmatprep.subr.bf16.mxu0 0
        %867 = vmatpush1.bf16.msra.mxu0 %v846
        %868 = vmatprep.subr.bf16.mxu0 0
        %869 = vmatpush1.bf16.msra.mxu0 %v847
        %870 = vmatprep.subr.bf16.mxu0 0
        %871 = vmatpush1.bf16.msra.mxu0 %v848
        %872 = vmatprep.subr.bf16.mxu0 0
        %873 = vmatpush1.bf16.msra.mxu0 %v849
        %874 = vmatprep.subr.bf16.mxu0 0
        %875 = vmatpush1.bf16.msra.mxu0 0
        %876 = vmatprep.subr.bf16.mxu0 0
        %877 = vmatpush1.bf16.msra.mxu0 0
        %878 = vmatprep.subr.bf16.mxu0 0
        %879 = vmatpush1.bf16.msra.mxu0 0
        %880 = vmatprep.subr.bf16.mxu0 0
        %881 = vmatpush1.bf16.msra.mxu0 0
        %882 = vmatprep.subr.bf16.mxu0 0
        %883 = vmatpush1.bf16.msra.mxu0 0
        %884 = vmatprep.subr.bf16.mxu0 0
        %885 = vmatpush1.bf16.msra.mxu0 0
        %886 = vmatprep.subr.bf16.mxu0 0
        %887 = vmatpush1.bf16.msra.mxu0 0
        %888 = vmatprep.subr.bf16.mxu0 0
        %889 = vmatpush1.bf16.msra.mxu0 0
        %890 = vmatprep.mubr.bf16.mxu0 0
        %891 = vmatmul.mubr.bf16.gmra.mrb[0].mxu0 %v802
        %v892 = vpop.f32.mrb[0].mxu0
        %v893 = vadd.f32 0.0, %v892
        %v894 = vpop.f32.mrb[0].mxu0
        %v895 = vpop.f32.mrb[0].mxu0
        %v896 = vadd.f32 0.0, %v895
        %v897 = vpop.f32.mrb[0].mxu0
        %898 = vmatprep.mubr.bf16.mxu0 0
        %899 = vmatmul.mubr.bf16.gmra.mrb[0].mxu0 %v803
        %v900 = vpop.f32.mrb[0].mxu0
        %v901 = vadd.f32 0.0, %v900
        %v902 = vpop.f32.mrb[0].mxu0
        %v903 = vpop.f32.mrb[0].mxu0
        %v904 = vadd.f32 0.0, %v903
        %v905 = vpop.f32.mrb[0].mxu0
        %906 = vmatprep.mubr.bf16.mxu0 0
        %907 = vmatmul.mubr.bf16.gmra.mrb[0].mxu0 %v804
        %v908 = vpop.f32.mrb[0].mxu0
        %v909 = vadd.f32 0.0, %v908
        %v910 = vpop.f32.mrb[0].mxu0
        %v911 = vpop.f32.mrb[0].mxu0
        %v912 = vadd.f32 0.0, %v911
        %v913 = vpop.f32.mrb[0].mxu0
        %914 = vmatprep.mubr.bf16.mxu0 0
        %915 = vmatmul.mubr.bf16.gmra.mrb[0].mxu0 %v805
        %v916 = vpop.f32.mrb[0].mxu0
        %v917 = vadd.f32 0.0, %v916
        %v918 = vpop.f32.mrb[0].mxu0
        %v919 = vpop.f32.mrb[0].mxu0
        %v920 = vadd.f32 0.0, %v919
        %v921 = vpop.f32.mrb[0].mxu0
        %922 = vdwg.mxu0
        %v939 = vunpack.c.l.b16 %v746
        %v940 = vunpack.c.l.b16 %v747
        %v941 = vunpack.c.l.b16 %v748
        %v942 = vunpack.c.l.b16 %v749
        %v943 = vunpack.c.l.b16 %v750
        %v944 = vunpack.c.l.b16 %v751
        %v945 = vunpack.c.l.b16 %v752
        %v946 = vunpack.c.l.b16 %v753
        %v947 = vunpack.c.l.b16 %v754
        %v948 = vunpack.c.l.b16 %v755
        %v949 = vunpack.c.l.b16 %v756
        %v950 = vunpack.c.l.b16 %v757
        %v951 = vunpack.c.l.b16 %v758
        %v952 = vunpack.c.l.b16 %v759
        %v953 = vunpack.c.l.b16 %v760
        %v954 = vunpack.c.l.b16 %v761
        %v955 = vpack.c.b16 %v940, %v939
        %v956 = vpack.c.b16 %v942, %v941
        %v957 = vpack.c.b16 %v944, %v943
        %v958 = vpack.c.b16 %v946, %v945
        %v959 = vpack.c.b16 %v948, %v947
        %v960 = vpack.c.b16 %v950, %v949
        %v961 = vpack.c.b16 %v952, %v951
        %v962 = vpack.c.b16 %v954, %v953
        %971 = vmatprep.subr.bf16.mxu0 0
        %972 = vmatpush1.bf16.msra.mxu0 %v955
        %973 = vmatprep.subr.bf16.mxu0 0
        %974 = vmatpush1.bf16.msra.mxu0 %v956
        %975 = vmatprep.subr.bf16.mxu0 0
        %976 = vmatpush1.bf16.msra.mxu0 %v957
        %977 = vmatprep.subr.bf16.mxu0 0
        %978 = vmatpush1.bf16.msra.mxu0 %v958
        %979 = vmatprep.subr.bf16.mxu0 0
        %980 = vmatpush1.bf16.msra.mxu0 %v959
        %981 = vmatprep.subr.bf16.mxu0 0
        %982 = vmatpush1.bf16.msra.mxu0 %v960
        %983 = vmatprep.subr.bf16.mxu0 0
        %984 = vmatpush1.bf16.msra.mxu0 %v961
        %985 = vmatprep.subr.bf16.mxu0 0
        %986 = vmatpush1.bf16.msra.mxu0 %v962
        %987 = vmatprep.subr.bf16.mxu0 0
        %988 = vmatpush1.bf16.msra.mxu0 0
        %989 = vmatprep.subr.bf16.mxu0 0
        %990 = vmatpush1.bf16.msra.mxu0 0
        %991 = vmatprep.subr.bf16.mxu0 0
        %992 = vmatpush1.bf16.msra.mxu0 0
        %993 = vmatprep.subr.bf16.mxu0 0
        %994 = vmatpush1.bf16.msra.mxu0 0
        %995 = vmatprep.subr.bf16.mxu0 0
        %996 = vmatpush1.bf16.msra.mxu0 0
        %997 = vmatprep.subr.bf16.mxu0 0
        %998 = vmatpush1.bf16.msra.mxu0 0
        %999 = vmatprep.subr.bf16.mxu0 0
        %1000 = vmatpush1.bf16.msra.mxu0 0
        %1001 = vmatprep.subr.bf16.mxu0 0
        %1002 = vmatpush1.bf16.msra.mxu0 0
        %1003 = vmatprep.mubr.bf16.mxu0 0
        %1004 = vmatmul.mubr.bf16.gmra.mrb[0].mxu0 %v742
        %v1005 = vpop.f32.mrb[0].mxu0
        %v1006 = vadd.f32 %v893, %v1005
        %v1007 = vpop.f32.mrb[0].mxu0
        %v1008 = vpop.f32.mrb[0].mxu0
        %v1009 = vadd.f32 %v896, %v1008
        %v1010 = vpop.f32.mrb[0].mxu0
        %1011 = vmatprep.mubr.bf16.mxu0 0
        %1012 = vmatmul.mubr.bf16.gmra.mrb[0].mxu0 %v743
        %v1013 = vpop.f32.mrb[0].mxu0
        %v1014 = vadd.f32 %v901, %v1013
        %v1015 = vpop.f32.mrb[0].mxu0
        %v1016 = vpop.f32.mrb[0].mxu0
        %v1017 = vadd.f32 %v904, %v1016
        %v1018 = vpop.f32.mrb[0].mxu0
        %1019 = vmatprep.mubr.bf16.mxu0 0
        %1020 = vmatmul.mubr.bf16.gmra.mrb[0].mxu0 %v744
        %v1021 = vpop.f32.mrb[0].mxu0
        %v1022 = vadd.f32 %v909, %v1021
        %v1023 = vpop.f32.mrb[0].mxu0
        %v1024 = vpop.f32.mrb[0].mxu0
        %v1025 = vadd.f32 %v912, %v1024
        %v1026 = vpop.f32.mrb[0].mxu0
        %1027 = vmatprep.mubr.bf16.mxu0 0
        %1028 = vmatmul.mubr.bf16.gmra.mrb[0].mxu0 %v745
        %v1029 = vpop.f32.mrb[0].mxu0
        %v1030 = vadd.f32 %v917, %v1029
        %v1031 = vpop.f32.mrb[0].mxu0
        %v1032 = vpop.f32.mrb[0].mxu0
        %v1033 = vadd.f32 %v920, %v1032
        %v1034 = vpop.f32.mrb[0].mxu0
        %1035 = vdwg.mxu0
        %v1036 = vld [vmem:[%s7] sm:$0x1]
        %v1038 = vlaneseq
        %v1039 = vshrl.u32 %v1038, 7
        %v1040 = vsub.s32 0, %v1039
        %v1041 = vrot.slane %v1036, %v1040
        %v1043 = vadd.f32 %v1006, %v1041
        %v1044 = vadd.f32 %v1009, %v1041
        %v1045 = vadd.f32 %v1014, %v1041
        %v1046 = vadd.f32 %v1017, %v1041
        %v1047 = vadd.f32 %v1022, %v1041
        %v1048 = vadd.f32 %v1025, %v1041
        %v1049 = vadd.f32 %v1030, %v1041
        %v1050 = vadd.f32 %v1033, %v1041
        %v1051 = vmax.f32 %v1043, 0.0
        %v1052 = vmax.f32 %v1044, 0.0
        %v1053 = vmax.f32 %v1045, 0.0
        %v1054 = vmax.f32 %v1046, 0.0
        %v1055 = vmax.f32 %v1047, 0.0
        %v1056 = vmax.f32 %v1048, 0.0
        %v1057 = vmax.f32 %v1049, 0.0
        %v1058 = vmax.f32 %v1050, 0.0
        %v1059 = vpack.c.bf16 %v1052, %v1051
        %v1060 = vpack.c.bf16 %v1054, %v1053
        %v1061 = vpack.c.bf16 %v1056, %v1055
        %v1062 = vpack.c.bf16 %v1058, %v1057
        %v1063 = vld [vmem:[%s8] sm:$0xf]
        %v1064 = vld [vmem:[%s8 + $0x4] sm:$0xf]
        %v1065 = vld [vmem:[%s8 + $0x8] sm:$0xf]
        %v1066 = vld [vmem:[%s8 + $0xc] sm:$0xf]
        %v1067 = vld [vmem:[%s8 + $0x10] sm:$0xf]
        %v1068 = vld [vmem:[%s8 + $0x14] sm:$0xf]
        %v1069 = vld [vmem:[%s8 + $0x18] sm:$0xf]
        %v1070 = vld [vmem:[%s8 + $0x1c] sm:$0xf]
        %v1071 = vld [vmem:[%s8 + $0x20] sm:$0xf]
        %v1072 = vld [vmem:[%s8 + $0x24] sm:$0xf]
        %v1073 = vld [vmem:[%s8 + $0x28] sm:$0xf]
        %v1074 = vld [vmem:[%s8 + $0x2c] sm:$0xf]
        %v1075 = vld [vmem:[%s8 + $0x30] sm:$0xf]
        %v1076 = vld [vmem:[%s8 + $0x34] sm:$0xf]
        %v1077 = vld [vmem:[%s8 + $0x38] sm:$0xf]
        %v1078 = vld [vmem:[%s8 + $0x3c] sm:$0xf]
        %v1079 = vld [vmem:[%s9] sm:$0x1]
        %v1081 = vlaneseq
        %v1082 = vshrl.u32 %v1081, 7
        %v1083 = vsub.s32 0, %v1082
        %v1084 = vrot.slane %v1079, %v1083
        %v1102 = vunpack.c.l.b16 %v1063
        %v1103 = vunpack.c.l.b16 %v1064
        %v1104 = vunpack.c.l.b16 %v1065
        %v1105 = vunpack.c.l.b16 %v1066
        %v1106 = vunpack.c.l.b16 %v1067
        %v1107 = vunpack.c.l.b16 %v1068
        %v1108 = vunpack.c.l.b16 %v1069
        %v1109 = vunpack.c.l.b16 %v1070
        %v1110 = vunpack.c.l.b16 %v1071
        %v1111 = vunpack.c.l.b16 %v1072
        %v1112 = vunpack.c.l.b16 %v1073
        %v1113 = vunpack.c.l.b16 %v1074
        %v1114 = vunpack.c.l.b16 %v1075
        %v1115 = vunpack.c.l.b16 %v1076
        %v1116 = vunpack.c.l.b16 %v1077
        %v1117 = vunpack.c.l.b16 %v1078
        %v1118 = vpack.c.b16 %v1103, %v1102
        %v1119 = vpack.c.b16 %v1105, %v1104
        %v1120 = vpack.c.b16 %v1107, %v1106
        %v1121 = vpack.c.b16 %v1109, %v1108
        %v1122 = vpack.c.b16 %v1111, %v1110
        %v1123 = vpack.c.b16 %v1113, %v1112
        %v1124 = vpack.c.b16 %v1115, %v1114
        %v1125 = vpack.c.b16 %v1117, %v1116
        %1134 = vmatprep.subr.bf16.mxu0 0
        %1135 = vmatpush1.bf16.msra.mxu0 %v1118
        %1136 = vmatprep.subr.bf16.mxu0 0
        %1137 = vmatpush1.bf16.msra.mxu0 %v1119
        %1138 = vmatprep.subr.bf16.mxu0 0
        %1139 = vmatpush1.bf16.msra.mxu0 %v1120
        %1140 = vmatprep.subr.bf16.mxu0 0
        %1141 = vmatpush1.bf16.msra.mxu0 %v1121
        %1142 = vmatprep.subr.bf16.mxu0 0
        %1143 = vmatpush1.bf16.msra.mxu0 %v1122
        %1144 = vmatprep.subr.bf16.mxu0 0
        %1145 = vmatpush1.bf16.msra.mxu0 %v1123
        %1146 = vmatprep.subr.bf16.mxu0 0
        %1147 = vmatpush1.bf16.msra.mxu0 %v1124
        %1148 = vmatprep.subr.bf16.mxu0 0
        %1149 = vmatpush1.bf16.msra.mxu0 %v1125
        %1150 = vmatprep.subr.bf16.mxu0 0
        %1151 = vmatpush1.bf16.msra.mxu0 0
        %1152 = vmatprep.subr.bf16.mxu0 0
        %1153 = vmatpush1.bf16.msra.mxu0 0
        %1154 = vmatprep.subr.bf16.mxu0 0
        %1155 = vmatpush1.bf16.msra.mxu0 0
        %1156 = vmatprep.subr.bf16.mxu0 0
        %1157 = vmatpush1.bf16.msra.mxu0 0
        %1158 = vmatprep.subr.bf16.mxu0 0
        %1159 = vmatpush1.bf16.msra.mxu0 0
        %1160 = vmatprep.subr.bf16.mxu0 0
        %1161 = vmatpush1.bf16.msra.mxu0 0
        %1162 = vmatprep.subr.bf16.mxu0 0
        %1163 = vmatpush1.bf16.msra.mxu0 0
        %1164 = vmatprep.subr.bf16.mxu0 0
        %1165 = vmatpush1.bf16.msra.mxu0 0
        %1166 = vmatprep.mubr.bf16.mxu0 0
        %1167 = vmatmul.mubr.bf16.gmra.mrb[0].mxu0 %v1059
        %v1168 = vpop.f32.mrb[0].mxu0
        %v1169 = vadd.f32 %v1084, %v1168
        %v1170 = vpop.f32.mrb[0].mxu0
        %v1171 = vpop.f32.mrb[0].mxu0
        %v1172 = vadd.f32 %v1084, %v1171
        %v1173 = vpop.f32.mrb[0].mxu0
        %1174 = vmatprep.mubr.bf16.mxu0 0
        %1175 = vmatmul.mubr.bf16.gmra.mrb[0].mxu0 %v1060
        %v1176 = vpop.f32.mrb[0].mxu0
        %v1177 = vadd.f32 %v1084, %v1176
        %v1178 = vpop.f32.mrb[0].mxu0
        %v1179 = vpop.f32.mrb[0].mxu0
        %v1180 = vadd.f32 %v1084, %v1179
        %v1181 = vpop.f32.mrb[0].mxu0
        %1182 = vmatprep.mubr.bf16.mxu0 0
        %1183 = vmatmul.mubr.bf16.gmra.mrb[0].mxu0 %v1061
        %v1184 = vpop.f32.mrb[0].mxu0
        %v1185 = vadd.f32 %v1084, %v1184
        %v1186 = vpop.f32.mrb[0].mxu0
        %v1187 = vpop.f32.mrb[0].mxu0
        %v1188 = vadd.f32 %v1084, %v1187
        %v1189 = vpop.f32.mrb[0].mxu0
        %1190 = vmatprep.mubr.bf16.mxu0 0
        %1191 = vmatmul.mubr.bf16.gmra.mrb[0].mxu0 %v1062
        %v1192 = vpop.f32.mrb[0].mxu0
        %v1193 = vadd.f32 %v1084, %v1192
        %v1194 = vpop.f32.mrb[0].mxu0
        %v1195 = vpop.f32.mrb[0].mxu0
        %v1196 = vadd.f32 %v1084, %v1195
        %v1197 = vpop.f32.mrb[0].mxu0
        %1198 = vdwg.mxu0
        %s1199 = sld [smem:[#allocation3]]
        %vm1200 = vcmp.gt.f32.partialorder %v1169, 0.0
        %vm1201 = vcmp.gt.f32.partialorder %v1172, 0.0
        %vm1202 = vcmp.gt.f32.partialorder %v1177, 0.0
        %vm1203 = vcmp.gt.f32.partialorder %v1180, 0.0
        %vm1204 = vcmp.gt.f32.partialorder %v1185, 0.0
        %vm1205 = vcmp.gt.f32.partialorder %v1188, 0.0
        %vm1206 = vcmp.gt.f32.partialorder %v1193, 0.0
        %vm1207 = vcmp.gt.f32.partialorder %v1196, 0.0
        %v1208 = vstv %s1199
        %v1209 = vmul.f32 %v1208, %v1169
        %v1210 = vmul.f32 %v1208, %v1172
        %v1211 = vmul.f32 %v1208, %v1177
        %v1212 = vmul.f32 %v1208, %v1180
        %v1213 = vmul.f32 %v1208, %v1185
        %v1214 = vmul.f32 %v1208, %v1188
        %v1215 = vmul.f32 %v1208, %v1193
        %v1216 = vmul.f32 %v1208, %v1196
        %v1217 = vsel %vm1200, %v1169, %v1209
        %v1218 = vsel %vm1201, %v1172, %v1210
        %v1219 = vsel %vm1202, %v1177, %v1211
        %v1220 = vsel %vm1203, %v1180, %v1212
        %v1221 = vsel %vm1204, %v1185, %v1213
        %v1222 = vsel %vm1205, %v1188, %v1214
        %v1223 = vsel %vm1206, %v1193, %v1215
        %v1224 = vsel %vm1207, %v1196, %v1216
        %1225 = vst [vmem:[%s407] sm:$0xff] %v1217
        %1226 = vst [vmem:[%s407 + $0x8] sm:$0xff] %v1218
        %1227 = vst [vmem:[%s407 + $0x10] sm:$0xff] %v1219
        %1228 = vst [vmem:[%s407 + $0x18] sm:$0xff] %v1220
        %1229 = vst [vmem:[%s407 + $0x20] sm:$0xff] %v1221
        %1230 = vst [vmem:[%s407 + $0x28] sm:$0xff] %v1222
        %1231 = vst [vmem:[%s407 + $0x30] sm:$0xff] %v1223
        %1232 = vst [vmem:[%s407 + $0x38] sm:$0xff] %v1224
      $region72: #{dgcn_forward.6} parent=59 // pred_fallthru
        _
      %s1233 = smul.u32 8, %s26
      %p1234 = scmp.lt.s32.totalorder %s1233, 15
      %s1235 = scalar_select %p1234, %s1233, 15
      %s1236 = smul.addr %s1235, 8
      %s1237 = scalar_lea.vmem %s10, %s1236
      // Predicated region
      $region73: #{dgcn_forward.6} parent=59 // pred_check
        %p1238 = pneg %p274
      $region74: #{dgcn_forward.6} parent=59 // pred_check_branch
        %1240 = sbr.rel (%p1238) target = $region76
      $region75: #{dgcn_forward.6} parent=59 // pred_region
        %s1241 = smul.u32 8, %s26
      $region76: #{dgcn_forward.6} parent=59 // pred_fallthru
        _
    $region60: #{dgcn_forward.6} parent=5 // pred_fallthru
      _
    %p1242 = scmp.le.s32.totalorder 2, %s17
    // Predicated region
    $region77: #{dgcn_forward.6} parent=5 // pred_check
      %p1243 = pneg %p1242
    $region78: #{dgcn_forward.6} parent=5 // pred_check_branch
      %1245 = sbr.rel (%p1243) target = $region80
    $region79: #{dgcn_forward.6} parent=5 // pred_region
      %s1246 = ssub.s32 %s17, 2
      // Predicated region
      $region81: #{dgcn_forward.6} parent=79 // pred_check
        %p1247 = pneg %p280
      $region82: #{dgcn_forward.6} parent=79 // pred_check_branch
        %1249 = sbr.rel (%p1247) target = $region84
      $region83: #{dgcn_forward.6} parent=79 // pred_region
        %s1250 = smul.u32 8, %s28
        %p1251 = scmp.lt.s32.totalorder %s1250, 15
        %s1252 = scalar_select %p1251, %s1250, 15
        %s1253 = smul.addr %s1252, 8
        %s1254 = scalar_lea.vmem %s10, %s1253
      $region84: #{dgcn_forward.6} parent=79 // pred_fallthru
        _
    $region80: #{dgcn_forward.6} parent=5 // pred_fallthru
      _
  $region6: #{dgcn_forward.6} parent=0 // loop_footer
    %s21 = sadd.s32 1, %s17
  $region7: #{dgcn_forward.6} parent=0 // loop_footer_branch
    %16 = sbr.rel target = $region3
  $region8: #{dgcn_forward.6} parent=0 // loop_exit
    _

</llo_original>
